<compile_context>
chip_gen: v6e
topology: v6e:2x2x1
jax: 0.10.0
libtpu: 0.0.40
codegen_flags: <defaults>
</compile_context>

<pallas_src>
import jax
import jax.numpy as jnp
import numpy as np
from jax.experimental import pallas as pl
from jax.experimental.pallas import tpu as pltpu

B, C, H, W = 2, 4, 16, 16          # per-image batch, channels, spatial
K = 3                               # conv kernel (pad=1, stride=1)
C_OUT = 8                           # conv output channels
FEAT = 32                           # feature dim of the final Linear

HP, WP = H + 2, W + 2               # zero-padded spatial dims (18, 18)
HWP = HP * WP                       # 324 flattened padded pixels per image
BHWP = B * HWP                      # 648: batch folded onto the lane axis
GUARD = (K // 2) * WP + (K // 2)    # 19: max |tap shift| in flattened coords
XLEN = BHWP + 2 * GUARD             # 686: guarded slab width


def _build_pool_selector():
    """(B, B*HWP) matrix: 1/(H*W) at each valid (non-border) pixel of image b."""
    sel = np.zeros((B, BHWP), np.float32)
    inv = 1.0 / (H * W)
    for b in range(B):
        for y in range(H):
            for x in range(W):
                sel[b, b * HWP + (y + 1) * WP + (x + 1)] = inv
    return sel


_POOL_SEL = _build_pool_selector()


def _pair_extractor_kernel(x_ref, w1_ref, b1_ref, sel_ref, w2_ref, b2_ref, out_ref):
    # x_ref:   (1, C, XLEN)      guarded, zero-padded, lane-flattened images
    # w1_ref:  (K*K*C_OUT, C)    conv taps; row = (kh*K + kw)*C_OUT + c_out
    # b1_ref:  (C_OUT, 1)        conv bias (broadcasts along lanes)
    # sel_ref: (B, B*HWP)        pooling selector
    # w2_ref:  (C_OUT, FEAT)     linear weight
    # b2_ref:  (1, FEAT)         linear bias
    # out_ref: (1, B, FEAT)
    xg = x_ref[0]                                        # (C, XLEN)
    w1 = w1_ref[...]                                     # (K*K*C_OUT, C)

    # Conv2d(pad=1) as 9 statically shifted lane-slices, each matmul'd against
    # its (C_OUT, C) tap and accumulated in f32 with HW on the lane axis.
    acc = jnp.zeros((C_OUT, BHWP), jnp.float32)
    for kk in range(K * K):
        di, dj = kk // K, kk % K
        off = GUARD + (di - 1) * WP + (dj - 1)           # static offset in [0, 2*GUARD]
        shifted = xg[:, off:off + BHWP]                  # (C, BHWP)
        w_tap = w1[kk * C_OUT:(kk + 1) * C_OUT, :]       # (C_OUT, C), 8-aligned rows
        acc = acc + jnp.dot(w_tap, shifted, preferred_element_type=jnp.float32)

    h = jnp.maximum(acc + b1_ref[...], 0.0)              # bias + ReLU, (C_OUT, BHWP)

    # Global average pool over the 256 valid pixels of each image: one A @ B^T
    # contraction; junk values at padded/guard lanes get selector weight 0.
    pooled = jax.lax.dot_general(
        sel_ref[...], h, (((1,), (1,)), ((), ())),
        preferred_element_type=jnp.float32)               # (B, C_OUT)

    feat = jnp.dot(pooled, w2_ref[...],
                   preferred_element_type=jnp.float32) + b2_ref[...]  # (B, FEAT)
    out_ref[0] = feat.astype(out_ref.dtype)


def _pack_pair(x1, x2):
    """(B,C,H,W) x2 -> (2, C, XLEN): pad, flatten (b, y, x) onto lanes, add guard."""
    x = jnp.stack([x1, x2], axis=0)                                   # (2, B, C, H, W)
    xp = jnp.pad(x, ((0, 0), (0, 0), (0, 0), (1, 1), (1, 1)))         # (2, B, C, HP, WP)
    xp = xp.transpose(0, 2, 1, 3, 4).reshape(2, C, BHWP)              # (2, C, B*HWP)
    return jnp.pad(xp, ((0, 0), (0, 0), (GUARD, GUARD)))              # (2, C, XLEN)


@jax.jit
def siamese_net_cont_forward(x1, x2, params):
    """Mirrors SiameseNetCont.forward: (extractor(x1), extractor(x2))."""
    w1, b1, w2, b2 = params
    xpair = _pack_pair(x1, x2)
    sel = jnp.asarray(_POOL_SEL)

    out = pl.pallas_call(
        _pair_extractor_kernel,
        out_shape=jax.ShapeDtypeStruct((2, B, FEAT), jnp.float32),
        grid=(2,),
        in_specs=[
            pl.BlockSpec((1, C, XLEN), lambda i: (i, 0, 0)),
            pl.BlockSpec((K * K * C_OUT, C), lambda i: (0, 0)),
            pl.BlockSpec((C_OUT, 1), lambda i: (0, 0)),
            pl.BlockSpec((B, BHWP), lambda i: (0, 0)),
            pl.BlockSpec((C_OUT, FEAT), lambda i: (0, 0)),
            pl.BlockSpec((1, FEAT), lambda i: (0, 0)),
        ],
        out_specs=pl.BlockSpec((1, B, FEAT), lambda i: (i, 0, 0)),
        compiler_params=pltpu.CompilerParams(
            dimension_semantics=("parallel",)),   # v7x: pair sharded across 2 TCs
    )(xpair, w1, b1, sel, w2, b2)
    return out[0], out[1]


def init_params(key):
    """Raw PyTorch-layout parameters of the extractor."""
    k1, k2, k3, k4 = jax.random.split(key, 4)
    conv_w = jax.random.normal(k1, (C_OUT, C, K, K), jnp.float32) * 0.1
    conv_b = jax.random.normal(k2, (C_OUT,), jnp.float32) * 0.1
    lin_w = jax.random.normal(k3, (FEAT, C_OUT), jnp.float32) * 0.1
    lin_b = jax.random.normal(k4, (FEAT,), jnp.float32) * 0.1
    return conv_w, conv_b, lin_w, lin_b


def pack_params(raw):
    """Raw params -> kernel layouts (taps kk-major, lane-broadcastable biases)."""
    conv_w, conv_b, lin_w, lin_b = raw
    w1 = conv_w.transpose(2, 3, 0, 1).reshape(K * K * C_OUT, C)   # (72, 4)
    b1 = conv_b.reshape(C_OUT, 1)                                 # (8, 1)
    w2 = lin_w.T                                                  # (8, 32)
    b2 = lin_b.reshape(1, FEAT)                                   # (1, 32)
    return w1, b1, w2, b2


def _reference_extractor(x, conv_w, conv_b, lin_w, lin_b):
    """Pure-JAX reference matching the PyTorch extractor."""
    h = jax.lax.conv_general_dilated(
        x, conv_w, window_strides=(1, 1), padding=((1, 1), (1, 1)),
        dimension_numbers=("NCHW", "OIHW", "NCHW"))
    h = jnp.maximum(h + conv_b[None, :, None, None], 0.0)
    pooled = h.mean(axis=(2, 3))
    return pooled @ lin_w.T + lin_b


if __name__ == "__main__":
    key = jax.random.PRNGKey(0)
    kx1, kx2, kp = jax.random.split(key, 3)
    x1 = jax.random.normal(kx1, (B, C, H, W), jnp.float32)
    x2 = jax.random.normal(kx2, (B, C, H, W), jnp.float32)
    raw = init_params(kp)
    params = pack_params(raw)

    out_1, out_2 = siamese_net_cont_forward(x1, x2, params)
    jax.block_until_ready((out_1, out_2))

    assert out_1.shape == (B, FEAT) and out_2.shape == (B, FEAT)
    assert out_1.dtype == jnp.float32 and out_2.dtype == jnp.float32

    # Numerical sanity check against a pure-JAX reference of the same module.
    ref_1 = _reference_extractor(x1, *raw)
    ref_2 = _reference_extractor(x2, *raw)
    np.testing.assert_allclose(np.asarray(out_1), np.asarray(ref_1), rtol=2e-2, atol=2e-2)
    np.testing.assert_allclose(np.asarray(out_2), np.asarray(ref_2), rtol=2e-2, atol=2e-2)

    print("KERNEL_OK")
</pallas_src>

<mosaic_0001>
module attributes {stable_mosaic.version = 11 : i64} {
  func.func @_pair_extractor_kernel(%arg0: i32, %arg1: memref<1x4x686xf32, #tpu.memory_space<vmem>>, %arg2: memref<72x4xf32, #tpu.memory_space<vmem>>, %arg3: memref<8x1xf32, #tpu.memory_space<vmem>>, %arg4: memref<2x648xf32, #tpu.memory_space<vmem>>, %arg5: memref<8x32xf32, #tpu.memory_space<vmem>>, %arg6: memref<1x32xf32, #tpu.memory_space<vmem>>, %arg7: memref<1x2x32xf32, #tpu.memory_space<vmem>>) attributes {dimension_semantics = [#tpu.dimension_semantics<parallel>], iteration_bounds = array<i64: 2>, scalar_prefetch = 0 : i64, scratch_operands = 0 : i64, tpu.core_type = #tpu.core_type<tc>, window_params = [{transform_indices = @transform_0, window_bounds = array<i64: 1, 4, 686>}, {pipeline_mode = #tpu.pipeline_mode<synchronous>, transform_indices = @transform_1, window_bounds = array<i64: 72, 4>}, {pipeline_mode = #tpu.pipeline_mode<synchronous>, transform_indices = @transform_2, window_bounds = array<i64: 8, 1>}, {pipeline_mode = #tpu.pipeline_mode<synchronous>, transform_indices = @transform_3, window_bounds = array<i64: 2, 648>}, {pipeline_mode = #tpu.pipeline_mode<synchronous>, transform_indices = @transform_4, window_bounds = array<i64: 8, 32>}, {pipeline_mode = #tpu.pipeline_mode<synchronous>, transform_indices = @transform_5, window_bounds = array<i64: 1, 32>}, {transform_indices = @transform_6, window_bounds = array<i64: 1, 2, 32>}]} {
    %c0 = arith.constant 0 : index
    %c0_0 = arith.constant 0 : index
    %c0_1 = arith.constant 0 : index
    %0 = vector.load %arg1[%c0, %c0_0, %c0_1] : memref<1x4x686xf32, #tpu.memory_space<vmem>>, vector<1x4x686xf32>
    %1 = vector.shape_cast %0 : vector<1x4x686xf32> to vector<4x686xf32>
    %c0_2 = arith.constant 0 : index
    %c0_3 = arith.constant 0 : index
    %2 = vector.load %arg2[%c0_2, %c0_3] : memref<72x4xf32, #tpu.memory_space<vmem>>, vector<72x4xf32>
    %cst = arith.constant 0.000000e+00 : f32
    %3 = vector.broadcast %cst : f32 to vector<8x648xf32>
    %4 = vector.extract_strided_slice %1 {offsets = [0, 0], sizes = [4, 648], strides = [1, 1]} : vector<4x686xf32> to vector<4x648xf32>
    %5 = vector.extract_strided_slice %2 {offsets = [0, 0], sizes = [8, 4], strides = [1, 1]} : vector<72x4xf32> to vector<8x4xf32>
    %cst_4 = arith.constant dense<0.000000e+00> : vector<8x648xf32>
    %6 = tpu.matmul %5, %4, %cst_4 {dimension_numbers = #tpu.dot_dimension_numbers<[1], [0], [0], [1], [0, 0, 1, 1], [], []>} : vector<8x4xf32>, vector<4x648xf32>, vector<8x648xf32> -> vector<8x648xf32>
    %7 = arith.addf %3, %6 : vector<8x648xf32>
    %8 = vector.extract_strided_slice %1 {offsets = [0, 1], sizes = [4, 648], strides = [1, 1]} : vector<4x686xf32> to vector<4x648xf32>
    %9 = vector.extract_strided_slice %2 {offsets = [8, 0], sizes = [8, 4], strides = [1, 1]} : vector<72x4xf32> to vector<8x4xf32>
    %cst_5 = arith.constant dense<0.000000e+00> : vector<8x648xf32>
    %10 = tpu.matmul %9, %8, %cst_5 {dimension_numbers = #tpu.dot_dimension_numbers<[1], [0], [0], [1], [0, 0, 1, 1], [], []>} : vector<8x4xf32>, vector<4x648xf32>, vector<8x648xf32> -> vector<8x648xf32>
    %11 = arith.addf %7, %10 : vector<8x648xf32>
    %12 = vector.extract_strided_slice %1 {offsets = [0, 2], sizes = [4, 648], strides = [1, 1]} : vector<4x686xf32> to vector<4x648xf32>
    %13 = vector.extract_strided_slice %2 {offsets = [16, 0], sizes = [8, 4], strides = [1, 1]} : vector<72x4xf32> to vector<8x4xf32>
    %cst_6 = arith.constant dense<0.000000e+00> : vector<8x648xf32>
    %14 = tpu.matmul %13, %12, %cst_6 {dimension_numbers = #tpu.dot_dimension_numbers<[1], [0], [0], [1], [0, 0, 1, 1], [], []>} : vector<8x4xf32>, vector<4x648xf32>, vector<8x648xf32> -> vector<8x648xf32>
    %15 = arith.addf %11, %14 : vector<8x648xf32>
    %16 = vector.extract_strided_slice %1 {offsets = [0, 18], sizes = [4, 648], strides = [1, 1]} : vector<4x686xf32> to vector<4x648xf32>
    %17 = vector.extract_strided_slice %2 {offsets = [24, 0], sizes = [8, 4], strides = [1, 1]} : vector<72x4xf32> to vector<8x4xf32>
    %cst_7 = arith.constant dense<0.000000e+00> : vector<8x648xf32>
    %18 = tpu.matmul %17, %16, %cst_7 {dimension_numbers = #tpu.dot_dimension_numbers<[1], [0], [0], [1], [0, 0, 1, 1], [], []>} : vector<8x4xf32>, vector<4x648xf32>, vector<8x648xf32> -> vector<8x648xf32>
    %19 = arith.addf %15, %18 : vector<8x648xf32>
    %20 = vector.extract_strided_slice %1 {offsets = [0, 19], sizes = [4, 648], strides = [1, 1]} : vector<4x686xf32> to vector<4x648xf32>
    %21 = vector.extract_strided_slice %2 {offsets = [32, 0], sizes = [8, 4], strides = [1, 1]} : vector<72x4xf32> to vector<8x4xf32>
    %cst_8 = arith.constant dense<0.000000e+00> : vector<8x648xf32>
    %22 = tpu.matmul %21, %20, %cst_8 {dimension_numbers = #tpu.dot_dimension_numbers<[1], [0], [0], [1], [0, 0, 1, 1], [], []>} : vector<8x4xf32>, vector<4x648xf32>, vector<8x648xf32> -> vector<8x648xf32>
    %23 = arith.addf %19, %22 : vector<8x648xf32>
    %24 = vector.extract_strided_slice %1 {offsets = [0, 20], sizes = [4, 648], strides = [1, 1]} : vector<4x686xf32> to vector<4x648xf32>
    %25 = vector.extract_strided_slice %2 {offsets = [40, 0], sizes = [8, 4], strides = [1, 1]} : vector<72x4xf32> to vector<8x4xf32>
    %cst_9 = arith.constant dense<0.000000e+00> : vector<8x648xf32>
    %26 = tpu.matmul %25, %24, %cst_9 {dimension_numbers = #tpu.dot_dimension_numbers<[1], [0], [0], [1], [0, 0, 1, 1], [], []>} : vector<8x4xf32>, vector<4x648xf32>, vector<8x648xf32> -> vector<8x648xf32>
    %27 = arith.addf %23, %26 : vector<8x648xf32>
    %28 = vector.extract_strided_slice %1 {offsets = [0, 36], sizes = [4, 648], strides = [1, 1]} : vector<4x686xf32> to vector<4x648xf32>
    %29 = vector.extract_strided_slice %2 {offsets = [48, 0], sizes = [8, 4], strides = [1, 1]} : vector<72x4xf32> to vector<8x4xf32>
    %cst_10 = arith.constant dense<0.000000e+00> : vector<8x648xf32>
    %30 = tpu.matmul %29, %28, %cst_10 {dimension_numbers = #tpu.dot_dimension_numbers<[1], [0], [0], [1], [0, 0, 1, 1], [], []>} : vector<8x4xf32>, vector<4x648xf32>, vector<8x648xf32> -> vector<8x648xf32>
    %31 = arith.addf %27, %30 : vector<8x648xf32>
    %32 = vector.extract_strided_slice %1 {offsets = [0, 37], sizes = [4, 648], strides = [1, 1]} : vector<4x686xf32> to vector<4x648xf32>
    %33 = vector.extract_strided_slice %2 {offsets = [56, 0], sizes = [8, 4], strides = [1, 1]} : vector<72x4xf32> to vector<8x4xf32>
    %cst_11 = arith.constant dense<0.000000e+00> : vector<8x648xf32>
    %34 = tpu.matmul %33, %32, %cst_11 {dimension_numbers = #tpu.dot_dimension_numbers<[1], [0], [0], [1], [0, 0, 1, 1], [], []>} : vector<8x4xf32>, vector<4x648xf32>, vector<8x648xf32> -> vector<8x648xf32>
    %35 = arith.addf %31, %34 : vector<8x648xf32>
    %36 = vector.extract_strided_slice %1 {offsets = [0, 38], sizes = [4, 648], strides = [1, 1]} : vector<4x686xf32> to vector<4x648xf32>
    %37 = vector.extract_strided_slice %2 {offsets = [64, 0], sizes = [8, 4], strides = [1, 1]} : vector<72x4xf32> to vector<8x4xf32>
    %cst_12 = arith.constant dense<0.000000e+00> : vector<8x648xf32>
    %38 = tpu.matmul %37, %36, %cst_12 {dimension_numbers = #tpu.dot_dimension_numbers<[1], [0], [0], [1], [0, 0, 1, 1], [], []>} : vector<8x4xf32>, vector<4x648xf32>, vector<8x648xf32> -> vector<8x648xf32>
    %39 = arith.addf %35, %38 : vector<8x648xf32>
    %c0_13 = arith.constant 0 : index
    %c0_14 = arith.constant 0 : index
    %40 = vector.load %arg3[%c0_13, %c0_14] : memref<8x1xf32, #tpu.memory_space<vmem>>, vector<8x1xf32>
    %41 = vector.broadcast %40 : vector<8x1xf32> to vector<8x648xf32>
    %42 = arith.addf %39, %41 : vector<8x648xf32>
    %cst_15 = arith.constant 0.000000e+00 : f32
    %43 = vector.broadcast %cst_15 : f32 to vector<8x648xf32>
    %44 = arith.maximumf %42, %43 : vector<8x648xf32>
    %c0_16 = arith.constant 0 : index
    %c0_17 = arith.constant 0 : index
    %45 = vector.load %arg4[%c0_16, %c0_17] : memref<2x648xf32, #tpu.memory_space<vmem>>, vector<2x648xf32>
    %cst_18 = arith.constant dense<0.000000e+00> : vector<2x8xf32>
    %46 = tpu.matmul %45, %44, %cst_18 {dimension_numbers = #tpu.dot_dimension_numbers<[1], [1], [0], [0], [0, 0, 1, 0], [], []>} : vector<2x648xf32>, vector<8x648xf32>, vector<2x8xf32> -> vector<2x8xf32>
    %c0_19 = arith.constant 0 : index
    %c0_20 = arith.constant 0 : index
    %47 = vector.load %arg5[%c0_19, %c0_20] : memref<8x32xf32, #tpu.memory_space<vmem>>, vector<8x32xf32>
    %cst_21 = arith.constant dense<0.000000e+00> : vector<2x32xf32>
    %48 = tpu.matmul %46, %47, %cst_21 {dimension_numbers = #tpu.dot_dimension_numbers<[1], [0], [0], [1], [0, 0, 1, 1], [], []>} : vector<2x8xf32>, vector<8x32xf32>, vector<2x32xf32> -> vector<2x32xf32>
    %c0_22 = arith.constant 0 : index
    %c0_23 = arith.constant 0 : index
    %49 = vector.load %arg6[%c0_22, %c0_23] : memref<1x32xf32, #tpu.memory_space<vmem>>, vector<1x32xf32>
    %50 = vector.broadcast %49 : vector<1x32xf32> to vector<2x32xf32>
    %51 = arith.addf %48, %50 : vector<2x32xf32>
    %c0_24 = arith.constant 0 : index
    %c0_25 = arith.constant 0 : index
    %c0_26 = arith.constant 0 : index
    %52 = vector.load %arg7[%c0_24, %c0_25, %c0_26] : memref<1x2x32xf32, #tpu.memory_space<vmem>>, vector<1x2x32xf32>
    %53 = vector.shape_cast %52 : vector<1x2x32xf32> to vector<2x32xf32>
    %54 = vector.shape_cast %51 : vector<2x32xf32> to vector<1x2x32xf32>
    tpu.vector_store %arg7[%c0_24, %c0_25, %c0_26], %54 {strides = array<i32>} : memref<1x2x32xf32, #tpu.memory_space<vmem>>, vector<1x2x32xf32>,
    return
  }
  func.func @transform_0(%arg0: i32) -> (i32, i32, i32) {
    %c0_i32 = arith.constant 0 : i32
    %c0_i32_0 = arith.constant 0 : i32
    %c0_i32_1 = arith.constant 0 : i32
    return %arg0, %c0_i32, %c0_i32_0 : i32, i32, i32
  }
  func.func @transform_1(%arg0: i32) -> (i32, i32) {
    %c0_i32 = arith.constant 0 : i32
    %c0_i32_0 = arith.constant 0 : i32
    %c0_i32_1 = arith.constant 0 : i32
    return %c0_i32, %c0_i32_0 : i32, i32
  }
  func.func @transform_2(%arg0: i32) -> (i32, i32) {
    %c0_i32 = arith.constant 0 : i32
    %c0_i32_0 = arith.constant 0 : i32
    %c0_i32_1 = arith.constant 0 : i32
    return %c0_i32, %c0_i32_0 : i32, i32
  }
  func.func @transform_3(%arg0: i32) -> (i32, i32) {
    %c0_i32 = arith.constant 0 : i32
    %c0_i32_0 = arith.constant 0 : i32
    %c0_i32_1 = arith.constant 0 : i32
    return %c0_i32, %c0_i32_0 : i32, i32
  }
  func.func @transform_4(%arg0: i32) -> (i32, i32) {
    %c0_i32 = arith.constant 0 : i32
    %c0_i32_0 = arith.constant 0 : i32
    %c0_i32_1 = arith.constant 0 : i32
    return %c0_i32, %c0_i32_0 : i32, i32
  }
  func.func @transform_5(%arg0: i32) -> (i32, i32) {
    %c0_i32 = arith.constant 0 : i32
    %c0_i32_0 = arith.constant 0 : i32
    %c0_i32_1 = arith.constant 0 : i32
    return %c0_i32, %c0_i32_0 : i32, i32
  }
  func.func @transform_6(%arg0: i32) -> (i32, i32, i32) {
    %c0_i32 = arith.constant 0 : i32
    %c0_i32_0 = arith.constant 0 : i32
    %c0_i32_1 = arith.constant 0 : i32
    return %arg0, %c0_i32, %c0_i32_0 : i32, i32, i32
  }
}

</mosaic_0001>

<llo_original>
// kernel: siamese_net_cont_forward.1
$region0: #{siamese_net_cont_forward.1}
  #allocation0 [shape = 'u32[]', space=smem, size = 0x4, offset = 0x4, fixed_abs, tag = 'smem constant byte address 0x4 - core index']
  #allocation1 [shape = 'u32[144,128]{1,0:T(1,128)}', space=vmem, size = 0x12000, scoped, tag = 'internal scratch']
  %s0 = inlined_call_operand.vmem [shape: f32[2,4,686], index: 0, kind: input, shape index: {}]
  %s1 = inlined_call_operand.vmem [shape: f32[72,4], index: 1, kind: input, shape index: {}]
  %s2 = inlined_call_operand.vmem [shape: f32[8,1], index: 2, kind: input, shape index: {}]
  %s3 = inlined_call_operand.vmem [shape: f32[2,648], index: 3, kind: input, shape index: {}]
  %s4 = inlined_call_operand.vmem [shape: f32[8,32], index: 4, kind: input, shape index: {}]
  %s5 = inlined_call_operand.vmem [shape: f32[1,32], index: 5, kind: input, shape index: {}]
  %s6 = inlined_call_operand.vmem [shape: f32[2,2,32], index: 6, kind: output, shape index: {}]
  %s7 = sld [smem:[#allocation0]]
  $region57: #{siamese_net_cont_forward.1} parent=0
    _
  %s9 = ssub.s32 1, %s7
  %s10 = scalar_select 0, %s9, %s7
  loop: start=0, step=1, limit=4
  $region2: #{siamese_net_cont_forward.1} parent=0 // loop_pre_header
    _
  $region3: #{siamese_net_cont_forward.1} parent=0 // loop_header
    %s12 = sphi 0, %s16
    %p13 = scmp.ge.s32.totalorder %s12, 4
    %s22 = sphi 0, %s24
    %s25 = sphi 0, %s22
    %s26 = sphi 0, %s25
    %s42 = sphi 0, %s26
    %s46 = sphi 0, %s46
    %s48 = sphi 0, %s46
    %s49 = sphi 0, %s48
    %s63 = sphi 0, %s49
    %s67 = sphi 0, %s67
    %s69 = sphi 0, %s67
    %s70 = sphi 0, %s69
    %s84 = sphi 0, %s70
    %s88 = sphi 0, %s88
    %s90 = sphi 0, %s88
    %s91 = sphi 0, %s90
    %s105 = sphi 0, %s91
    %s109 = sphi 0, %s109
    %s111 = sphi 0, %s109
    %s112 = sphi 0, %s111
    %s126 = sphi 0, %s112
    %s130 = sphi 0, %s130
    %s132 = sphi 0, %s130
    %s133 = sphi 0, %s132
    %s147 = sphi 0, %s133
    %s153 = sphi 0, %s155
    %s156 = sphi 0, %s153
    %s157 = sphi 0, %s156
    %s173 = sphi 0, %s157
  $region4: #{siamese_net_cont_forward.1} parent=0 // loop_header_branch
    %15 = sbr.rel (%p13) target = $region8
  $region5: #{siamese_net_cont_forward.1} parent=0 // loop_body
    %s17 = ssub.s32 %s12, 1
    %s18 = ssub.s32 %s12, 2
    %s19 = sadd.s32 %s12, 1
    %s20 = ssub.s32 %s12, %s19
    %p21 = scmp.eq.s32.totalorder %s20, 0
    %s23 = sadd.s32 %s22, 1
    %s24 = scalar_select %p21, %s22, %s23
    %p27 = pneg %p21
    %p28 = scmp.eq.s32.totalorder %s12, 1
    %p29 = por %p27, %p28
    %p30 = scmp.ne.s32.totalorder %s22, %s25
    %p31 = scmp.eq.s32.totalorder %s12, 0
    %p32 = por %p30, %p31
    %p33 = scmp.ne.s32.totalorder %s22, %s25
    %p34 = scmp.eq.s32.totalorder %s17, 1
    %p35 = por %p33, %p34
    %p36 = scmp.ne.s32.totalorder %s25, %s26
    %p37 = scmp.eq.s32.totalorder %s17, 0
    %p38 = por %p36, %p37
    %p39 = scmp.ne.s32.totalorder %s25, %s26
    %p40 = scmp.eq.s32.totalorder %s18, 1
    %p41 = por %p39, %p40
    %p43 = scmp.ne.s32.totalorder %s26, %s42
    %p44 = scmp.eq.s32.totalorder %s18, 0
    %p45 = por %p43, %p44
    %s47 = sadd.s32 %s46, 1
    %p50 = scmp.eq.s32.totalorder %s12, 1
    %p51 = scmp.ne.s32.totalorder %s46, %s48
    %p52 = scmp.eq.s32.totalorder %s12, 0
    %p53 = por %p51, %p52
    %p54 = scmp.ne.s32.totalorder %s46, %s48
    %p55 = scmp.eq.s32.totalorder %s17, 1
    %p56 = por %p54, %p55
    %p57 = scmp.ne.s32.totalorder %s48, %s49
    %p58 = scmp.eq.s32.totalorder %s17, 0
    %p59 = por %p57, %p58
    %p60 = scmp.ne.s32.totalorder %s48, %s49
    %p61 = scmp.eq.s32.totalorder %s18, 1
    %p62 = por %p60, %p61
    %p64 = scmp.ne.s32.totalorder %s49, %s63
    %p65 = scmp.eq.s32.totalorder %s18, 0
    %p66 = por %p64, %p65
    %s68 = sadd.s32 %s67, 1
    %p71 = scmp.eq.s32.totalorder %s12, 1
    %p72 = scmp.ne.s32.totalorder %s67, %s69
    %p73 = scmp.eq.s32.totalorder %s12, 0
    %p74 = por %p72, %p73
    %p75 = scmp.ne.s32.totalorder %s67, %s69
    %p76 = scmp.eq.s32.totalorder %s17, 1
    %p77 = por %p75, %p76
    %p78 = scmp.ne.s32.totalorder %s69, %s70
    %p79 = scmp.eq.s32.totalorder %s17, 0
    %p80 = por %p78, %p79
    %p81 = scmp.ne.s32.totalorder %s69, %s70
    %p82 = scmp.eq.s32.totalorder %s18, 1
    %p83 = por %p81, %p82
    %p85 = scmp.ne.s32.totalorder %s70, %s84
    %p86 = scmp.eq.s32.totalorder %s18, 0
    %p87 = por %p85, %p86
    %s89 = sadd.s32 %s88, 1
    %p92 = scmp.eq.s32.totalorder %s12, 1
    %p93 = scmp.ne.s32.totalorder %s88, %s90
    %p94 = scmp.eq.s32.totalorder %s12, 0
    %p95 = por %p93, %p94
    %p96 = scmp.ne.s32.totalorder %s88, %s90
    %p97 = scmp.eq.s32.totalorder %s17, 1
    %p98 = por %p96, %p97
    %p99 = scmp.ne.s32.totalorder %s90, %s91
    %p100 = scmp.eq.s32.totalorder %s17, 0
    %p101 = por %p99, %p100
    %p102 = scmp.ne.s32.totalorder %s90, %s91
    %p103 = scmp.eq.s32.totalorder %s18, 1
    %p104 = por %p102, %p103
    %p106 = scmp.ne.s32.totalorder %s91, %s105
    %p107 = scmp.eq.s32.totalorder %s18, 0
    %p108 = por %p106, %p107
    %s110 = sadd.s32 %s109, 1
    %p113 = scmp.eq.s32.totalorder %s12, 1
    %p114 = scmp.ne.s32.totalorder %s109, %s111
    %p115 = scmp.eq.s32.totalorder %s12, 0
    %p116 = por %p114, %p115
    %p117 = scmp.ne.s32.totalorder %s109, %s111
    %p118 = scmp.eq.s32.totalorder %s17, 1
    %p119 = por %p117, %p118
    %p120 = scmp.ne.s32.totalorder %s111, %s112
    %p121 = scmp.eq.s32.totalorder %s17, 0
    %p122 = por %p120, %p121
    %p123 = scmp.ne.s32.totalorder %s111, %s112
    %p124 = scmp.eq.s32.totalorder %s18, 1
    %p125 = por %p123, %p124
    %p127 = scmp.ne.s32.totalorder %s112, %s126
    %p128 = scmp.eq.s32.totalorder %s18, 0
    %p129 = por %p127, %p128
    %s131 = sadd.s32 %s130, 1
    %p134 = scmp.eq.s32.totalorder %s12, 1
    %p135 = scmp.ne.s32.totalorder %s130, %s132
    %p136 = scmp.eq.s32.totalorder %s12, 0
    %p137 = por %p135, %p136
    %p138 = scmp.ne.s32.totalorder %s130, %s132
    %p139 = scmp.eq.s32.totalorder %s17, 1
    %p140 = por %p138, %p139
    %p141 = scmp.ne.s32.totalorder %s132, %s133
    %p142 = scmp.eq.s32.totalorder %s17, 0
    %p143 = por %p141, %p142
    %p144 = scmp.ne.s32.totalorder %s132, %s133
    %p145 = scmp.eq.s32.totalorder %s18, 1
    %p146 = por %p144, %p145
    %p148 = scmp.ne.s32.totalorder %s133, %s147
    %p149 = scmp.eq.s32.totalorder %s18, 0
    %p150 = por %p148, %p149
    %s151 = ssub.s32 %s12, %s19
    %p152 = scmp.eq.s32.totalorder %s151, 0
    %s154 = sadd.s32 %s153, 1
    %s155 = scalar_select %p152, %s153, %s154
    %p158 = pneg %p152
    %p159 = scmp.eq.s32.totalorder %s12, 1
    %p160 = por %p158, %p159
    %p161 = scmp.ne.s32.totalorder %s153, %s156
    %p162 = scmp.eq.s32.totalorder %s12, 0
    %p163 = por %p161, %p162
    %p164 = scmp.ne.s32.totalorder %s153, %s156
    %p165 = scmp.eq.s32.totalorder %s17, 1
    %p166 = por %p164, %p165
    %p167 = scmp.ne.s32.totalorder %s156, %s157
    %p168 = scmp.eq.s32.totalorder %s17, 0
    %p169 = por %p167, %p168
    %p170 = scmp.ne.s32.totalorder %s156, %s157
    %p171 = scmp.eq.s32.totalorder %s18, 1
    %p172 = por %p170, %p171
    %p174 = scmp.ne.s32.totalorder %s157, %s173
    %p175 = scmp.eq.s32.totalorder %s18, 0
    %p176 = por %p174, %p175
    %p177 = scmp.le.s32.totalorder 1, %s12
    %p178 = scmp.lt.s32.totalorder %s12, 3
    %p179 = pnand %p177, %p178
    %p180 = pneg %p179
    // Predicated region
    $region9: #{siamese_net_cont_forward.1} parent=5 // pred_check
      _
    $region10: #{siamese_net_cont_forward.1} parent=5 // pred_check_branch
      %182 = sbr.rel (%p179) target = $region12
    $region11: #{siamese_net_cont_forward.1} parent=5 // pred_region
      %s183 = ssub.s32 %s12, 1
      // Predicated region
      $region13: #{siamese_net_cont_forward.1} parent=11 // pred_check
        %p184 = pneg %p59
      $region14: #{siamese_net_cont_forward.1} parent=11 // pred_check_branch
        %186 = sbr.rel (%p184) target = $region16
      $region15: #{siamese_net_cont_forward.1} parent=11 // pred_region
        _
      $region16: #{siamese_net_cont_forward.1} parent=11 // pred_fallthru
        _
      // Predicated region
      $region17: #{siamese_net_cont_forward.1} parent=11 // pred_check
        %p187 = pneg %p80
      $region18: #{siamese_net_cont_forward.1} parent=11 // pred_check_branch
        %189 = sbr.rel (%p187) target = $region20
      $region19: #{siamese_net_cont_forward.1} parent=11 // pred_region
        _
      $region20: #{siamese_net_cont_forward.1} parent=11 // pred_fallthru
        _
      // Predicated region
      $region21: #{siamese_net_cont_forward.1} parent=11 // pred_check
        %p190 = pneg %p101
      $region22: #{siamese_net_cont_forward.1} parent=11 // pred_check_branch
        %192 = sbr.rel (%p190) target = $region24
      $region23: #{siamese_net_cont_forward.1} parent=11 // pred_region
        _
      $region24: #{siamese_net_cont_forward.1} parent=11 // pred_fallthru
        _
      // Predicated region
      $region25: #{siamese_net_cont_forward.1} parent=11 // pred_check
        %p193 = pneg %p122
      $region26: #{siamese_net_cont_forward.1} parent=11 // pred_check_branch
        %195 = sbr.rel (%p193) target = $region28
      $region27: #{siamese_net_cont_forward.1} parent=11 // pred_region
        _
      $region28: #{siamese_net_cont_forward.1} parent=11 // pred_fallthru
        _
      // Predicated region
      $region29: #{siamese_net_cont_forward.1} parent=11 // pred_check
        %p196 = pneg %p143
      $region30: #{siamese_net_cont_forward.1} parent=11 // pred_check_branch
        %198 = sbr.rel (%p196) target = $region32
      $region31: #{siamese_net_cont_forward.1} parent=11 // pred_region
        _
      $region32: #{siamese_net_cont_forward.1} parent=11 // pred_fallthru
        _
    $region12: #{siamese_net_cont_forward.1} parent=5 // pred_fallthru
      _
    %p199 = scmp.lt.s32.totalorder %s12, 2
    // Predicated region
    $region33: #{siamese_net_cont_forward.1} parent=5 // pred_check
      %p200 = pneg %p199
    $region34: #{siamese_net_cont_forward.1} parent=5 // pred_check_branch
      %202 = sbr.rel (%p200) target = $region36
    $region35: #{siamese_net_cont_forward.1} parent=5 // pred_region
      // Predicated region
      $region37: #{siamese_net_cont_forward.1} parent=35 // pred_check
        %p203 = pneg %p32
      $region38: #{siamese_net_cont_forward.1} parent=35 // pred_check_branch
        %205 = sbr.rel (%p203) target = $region40
      $region39: #{siamese_net_cont_forward.1} parent=35 // pred_region
        %p206 = scmp.lt.s32.totalorder %s12, 1
        %s207 = scalar_select %p206, %s12, 1
        %s208 = smul.addr %s207, 6
        %s209 = smul.addr %s208, 4
        %s210 = scalar_lea.vmem %s0, %s209
      $region40: #{siamese_net_cont_forward.1} parent=35 // pred_fallthru
        _
    $region36: #{siamese_net_cont_forward.1} parent=5 // pred_fallthru
      _
    %p211 = scmp.le.s32.totalorder 1, %s12
    %p212 = scmp.lt.s32.totalorder %s12, 3
    %p213 = pnand %p211, %p212
    %p214 = pneg %p213
    // Predicated region
    $region41: #{siamese_net_cont_forward.1} parent=5 // pred_check
      _
    $region42: #{siamese_net_cont_forward.1} parent=5 // pred_check_branch
      %216 = sbr.rel (%p213) target = $region44
    $region43: #{siamese_net_cont_forward.1} parent=5 // pred_region
      %s217 = ssub.s32 %s12, 1
      %p218 = scmp.lt.s32.totalorder %s17, 1
      %s219 = scalar_select %p218, %s17, 1
      %s220 = smul.addr %s219, 6
      %s221 = smul.addr %s220, 4
      %s222 = scalar_lea.vmem %s0, %s221
      %p223 = pneg %p38
      %p224 = pneg %p35
      %p225 = pneg %p59
      %p226 = pneg %p56
      %p227 = pneg %p80
      %p228 = pneg %p77
      %p229 = pneg %p101
      %p230 = pneg %p98
      %p231 = pneg %p122
      %p232 = pneg %p119
      %p233 = pneg %p143
      %p234 = pneg %p140
      %p235 = pneg %p169
      %p236 = pneg %p166
      %p237 = scmp.lt.s32.totalorder %s17, 1
      %s238 = scalar_select %p237, %s17, 1
      %s239 = smul.addr %s238, 2
      %s240 = scalar_lea.vmem %s6, %s239
      %p241 = scmp.lt.s32.totalorder %s17, 1
      %s242 = scalar_select %p241, %s17, 1
      %s243 = smul.addr %s242, 6
      %s244 = smul.addr %s243, 4
      %s245 = scalar_lea.vmem %s0, %s244
      %p246 = scmp.lt.s32.totalorder %s17, 1
      %s247 = scalar_select %p246, %s17, 1
      %s248 = smul.addr %s247, 2
      %s249 = scalar_lea.vmem %s6, %s248
      %v250 = vld [vmem:[%s245] sm:$0xff]
      %v251 = vld [vmem:[%s245 + $0x8] sm:$0xff]
      %v252 = vld [vmem:[%s245 + $0x10] sm:$0xff]
      %v253 = vld [vmem:[%s1] sm:$0xff]
      %v254 = vld [vmem:[%s1 + $0x8] sm:$0xff]
      %v255 = vld [vmem:[%s1 + $0x10] sm:$0xff]
      %v256 = vld [vmem:[%s1 + $0x18] sm:$0xff]
      %v257 = vld [vmem:[%s1 + $0x20] sm:$0xff]
      %v258 = vld [vmem:[%s1 + $0x28] sm:$0xff]
      %v259 = vld [vmem:[%s1 + $0x30] sm:$0xff]
      %v260 = vld [vmem:[%s1 + $0x38] sm:$0xff]
      %v261 = vld [vmem:[%s1 + $0x40] sm:$0xff]
      %v265 = vcombine.high %v250, %v250
      %v266 = vcombine.high %v251, %v251
      %v267 = vcombine.high %v252, %v252
      %268 = vrot.lane.b32.xlu0 %v250, 127
      %v269 = vpop.permute.xlu0 %268
      %270 = vrot.lane.b32.xlu0 %v265, 127
      %v271 = vpop.permute.xlu0 %270
      %272 = vrot.lane.b32.xlu0 %v251, 127
      %v273 = vpop.permute.xlu0 %272
      %274 = vrot.lane.b32.xlu0 %v266, 127
      %v275 = vpop.permute.xlu0 %274
      %276 = vrot.lane.b32.xlu0 %v252, 127
      %v277 = vpop.permute.xlu0 %276
      %278 = vrot.lane.b32.xlu0 %v267, 127
      %v279 = vpop.permute.xlu0 %278
      %vm280 = vcmask 1039360
      %v281 = vsel %vm280, %v269, %v271
      %v282 = vsel %vm280, %v271, %v273
      %v283 = vsel %vm280, %v273, %v275
      %v284 = vsel %vm280, %v275, %v277
      %v285 = vsel %vm280, %v277, %v279
      %vm286 = vcmask 31744
      %v288 = vsel %vm286, %v254, 0
      %vm290 = vcmask 1043456
      %v291 = vsel %vm290, %v281, 0
      %v293 = vsel %vm290, %v282, 0
      %v295 = vsel %vm290, %v283, 0
      %v297 = vsel %vm290, %v284, 0
      %v299 = vsel %vm290, %v285, 0
      %v301 = vsel %vm290, %v279, 0
      %303 = vmatprep.subr.mxu0 0.0
      %304 = vmatpush1.msra.mxu0 0.0
      %305 = vmatprep.subr.mxu0 0.0
      %306 = vmatpush1.msra.mxu0 0.0
      %307 = vmatprep.subr.mxu0 0.0
      %308 = vmatpush1.msra.mxu0 0.0
      %309 = vmatprep.subr.mxu0 0.0
      %310 = vmatpush1.msra.mxu0 0.0
      %311 = vmatprep.subr.mxu0 0.0
      %312 = vmatpush1.msra.mxu0 0.0
      %313 = vmatprep.subr.mxu0 0.0
      %314 = vmatpush1.msra.mxu0 0.0
      %315 = vmatprep.subr.mxu0 0.0
      %316 = vmatpush1.msra.mxu0 0.0
      %317 = vmatprep.subr.mxu0 0.0
      %318 = vmatpush1.msra.mxu0 0.0
      %319 = vmatprep.subr.mxu0 0.0
      %320 = vmatpush1.msra.mxu0 0.0
      %321 = vmatprep.subr.mxu0 0.0
      %322 = vmatpush1.msra.mxu0 0.0
      %323 = vmatprep.subr.mxu0 0.0
      %324 = vmatpush1.msra.mxu0 0.0
      %325 = vmatprep.subr.mxu0 0.0
      %326 = vmatpush1.msra.mxu0 0.0
      %327 = vmatprep.subr.mxu0 0.0
      %328 = vmatpush1.msra.mxu0 0.0
      %329 = vmatprep.subr.mxu0 0.0
      %330 = vmatpush1.msra.mxu0 0.0
      %331 = vmatprep.subr.mxu0 0.0
      %332 = vmatpush1.msra.mxu0 0.0
      %333 = vmatprep.subr.mxu0 %v293
      %334 = vmatpush1.msra.mxu0 %v291
      %335 = vmatprep.subr.mxu0 0.0
      %336 = vmatpush2.msra.mxu0 0.0
      %337 = vmatprep.subr.mxu0 0.0
      %338 = vmatpush2.msra.mxu0 0.0
      %339 = vmatprep.subr.mxu0 0.0
      %340 = vmatpush2.msra.mxu0 0.0
      %341 = vmatprep.subr.mxu0 0.0
      %342 = vmatpush2.msra.mxu0 0.0
      %343 = vmatprep.subr.mxu0 0.0
      %344 = vmatpush2.msra.mxu0 0.0
      %345 = vmatprep.subr.mxu0 0.0
      %346 = vmatpush2.msra.mxu0 0.0
      %347 = vmatprep.subr.mxu0 0.0
      %348 = vmatpush2.msra.mxu0 0.0
      %349 = vmatprep.subr.mxu0 0.0
      %350 = vmatpush2.msra.mxu0 0.0
      %351 = vmatprep.subr.mxu0 0.0
      %352 = vmatpush2.msra.mxu0 0.0
      %353 = vmatprep.subr.mxu0 0.0
      %354 = vmatpush2.msra.mxu0 0.0
      %355 = vmatprep.subr.mxu0 0.0
      %356 = vmatpush2.msra.mxu0 0.0
      %357 = vmatprep.subr.mxu0 0.0
      %358 = vmatpush2.msra.mxu0 0.0
      %359 = vmatprep.subr.mxu0 0.0
      %360 = vmatpush2.msra.mxu0 0.0
      %361 = vmatprep.subr.mxu0 0.0
      %362 = vmatpush2.msra.mxu0 0.0
      %363 = vmatprep.subr.mxu0 0.0
      %364 = vmatpush2.msra.mxu0 0.0
      %365 = vmatprep.subr.mxu0 0.0
      %366 = vmatpush2.msra.mxu0 0.0
      %367 = vmatprep.mubr.f32.mxu0 0.0
      %368 = vmatmul.mubr.f32.gmra.mxu0 %v288
      %v369 = vpop.f32.mrf.mxu0
      %v370 = vadd.f32 0.0, %v369
      %v371 = vpop.f32.mrf.mxu0
      %v372 = vadd.f32 0.0, %v371
      %373 = vdwg.mxu0
      %374 = vmatprep.subr.mxu0 0.0
      %375 = vmatpush1.msra.mxu0 0.0
      %376 = vmatprep.subr.mxu0 0.0
      %377 = vmatpush1.msra.mxu0 0.0
      %378 = vmatprep.subr.mxu0 0.0
      %379 = vmatpush1.msra.mxu0 0.0
      %380 = vmatprep.subr.mxu0 0.0
      %381 = vmatpush1.msra.mxu0 0.0
      %382 = vmatprep.subr.mxu0 0.0
      %383 = vmatpush1.msra.mxu0 0.0
      %384 = vmatprep.subr.mxu0 0.0
      %385 = vmatpush1.msra.mxu0 0.0
      %386 = vmatprep.subr.mxu0 0.0
      %387 = vmatpush1.msra.mxu0 0.0
      %388 = vmatprep.subr.mxu0 0.0
      %389 = vmatpush1.msra.mxu0 0.0
      %390 = vmatprep.subr.mxu0 0.0
      %391 = vmatpush1.msra.mxu0 0.0
      %392 = vmatprep.subr.mxu0 0.0
      %393 = vmatpush1.msra.mxu0 0.0
      %394 = vmatprep.subr.mxu0 0.0
      %395 = vmatpush1.msra.mxu0 0.0
      %396 = vmatprep.subr.mxu0 0.0
      %397 = vmatpush1.msra.mxu0 0.0
      %398 = vmatprep.subr.mxu0 0.0
      %399 = vmatpush1.msra.mxu0 0.0
      %400 = vmatprep.subr.mxu0 0.0
      %401 = vmatpush1.msra.mxu0 0.0
      %402 = vmatprep.subr.mxu0 0.0
      %403 = vmatpush1.msra.mxu0 0.0
      %404 = vmatprep.subr.mxu0 %v297
      %405 = vmatpush1.msra.mxu0 %v295
      %406 = vmatprep.subr.mxu0 0.0
      %407 = vmatpush2.msra.mxu0 0.0
      %408 = vmatprep.subr.mxu0 0.0
      %409 = vmatpush2.msra.mxu0 0.0
      %410 = vmatprep.subr.mxu0 0.0
      %411 = vmatpush2.msra.mxu0 0.0
      %412 = vmatprep.subr.mxu0 0.0
      %413 = vmatpush2.msra.mxu0 0.0
      %414 = vmatprep.subr.mxu0 0.0
      %415 = vmatpush2.msra.mxu0 0.0
      %416 = vmatprep.subr.mxu0 0.0
      %417 = vmatpush2.msra.mxu0 0.0
      %418 = vmatprep.subr.mxu0 0.0
      %419 = vmatpush2.msra.mxu0 0.0
      %420 = vmatprep.subr.mxu0 0.0
      %421 = vmatpush2.msra.mxu0 0.0
      %422 = vmatprep.subr.mxu0 0.0
      %423 = vmatpush2.msra.mxu0 0.0
      %424 = vmatprep.subr.mxu0 0.0
      %425 = vmatpush2.msra.mxu0 0.0
      %426 = vmatprep.subr.mxu0 0.0
      %427 = vmatpush2.msra.mxu0 0.0
      %428 = vmatprep.subr.mxu0 0.0
      %429 = vmatpush2.msra.mxu0 0.0
      %430 = vmatprep.subr.mxu0 0.0
      %431 = vmatpush2.msra.mxu0 0.0
      %432 = vmatprep.subr.mxu0 0.0
      %433 = vmatpush2.msra.mxu0 0.0
      %434 = vmatprep.subr.mxu0 0.0
      %435 = vmatpush2.msra.mxu0 0.0
      %436 = vmatprep.subr.mxu0 0.0
      %437 = vmatpush2.msra.mxu0 0.0
      %438 = vmatprep.mubr.f32.mxu0 0.0
      %439 = vmatmul.mubr.f32.gmra.mxu0 %v288
      %v440 = vpop.f32.mrf.mxu0
      %v441 = vadd.f32 0.0, %v440
      %v442 = vpop.f32.mrf.mxu0
      %v443 = vadd.f32 0.0, %v442
      %444 = vdwg.mxu0
      %445 = vmatprep.subr.mxu0 0.0
      %446 = vmatpush1.msra.mxu0 0.0
      %447 = vmatprep.subr.mxu0 0.0
      %448 = vmatpush1.msra.mxu0 0.0
      %449 = vmatprep.subr.mxu0 0.0
      %450 = vmatpush1.msra.mxu0 0.0
      %451 = vmatprep.subr.mxu0 0.0
      %452 = vmatpush1.msra.mxu0 0.0
      %453 = vmatprep.subr.mxu0 0.0
      %454 = vmatpush1.msra.mxu0 0.0
      %455 = vmatprep.subr.mxu0 0.0
      %456 = vmatpush1.msra.mxu0 0.0
      %457 = vmatprep.subr.mxu0 0.0
      %458 = vmatpush1.msra.mxu0 0.0
      %459 = vmatprep.subr.mxu0 0.0
      %460 = vmatpush1.msra.mxu0 0.0
      %461 = vmatprep.subr.mxu0 0.0
      %462 = vmatpush1.msra.mxu0 0.0
      %463 = vmatprep.subr.mxu0 0.0
      %464 = vmatpush1.msra.mxu0 0.0
      %465 = vmatprep.subr.mxu0 0.0
      %466 = vmatpush1.msra.mxu0 0.0
      %467 = vmatprep.subr.mxu0 0.0
      %468 = vmatpush1.msra.mxu0 0.0
      %469 = vmatprep.subr.mxu0 0.0
      %470 = vmatpush1.msra.mxu0 0.0
      %471 = vmatprep.subr.mxu0 0.0
      %472 = vmatpush1.msra.mxu0 0.0
      %473 = vmatprep.subr.mxu0 0.0
      %474 = vmatpush1.msra.mxu0 0.0
      %475 = vmatprep.subr.mxu0 %v301
      %476 = vmatpush1.msra.mxu0 %v299
      %477 = vmatprep.subr.mxu0 0.0
      %478 = vmatpush2.msra.mxu0 0.0
      %479 = vmatprep.subr.mxu0 0.0
      %480 = vmatpush2.msra.mxu0 0.0
      %481 = vmatprep.subr.mxu0 0.0
      %482 = vmatpush2.msra.mxu0 0.0
      %483 = vmatprep.subr.mxu0 0.0
      %484 = vmatpush2.msra.mxu0 0.0
      %485 = vmatprep.subr.mxu0 0.0
      %486 = vmatpush2.msra.mxu0 0.0
      %487 = vmatprep.subr.mxu0 0.0
      %488 = vmatpush2.msra.mxu0 0.0
      %489 = vmatprep.subr.mxu0 0.0
      %490 = vmatpush2.msra.mxu0 0.0
      %491 = vmatprep.subr.mxu0 0.0
      %492 = vmatpush2.msra.mxu0 0.0
      %493 = vmatprep.subr.mxu0 0.0
      %494 = vmatpush2.msra.mxu0 0.0
      %495 = vmatprep.subr.mxu0 0.0
      %496 = vmatpush2.msra.mxu0 0.0
      %497 = vmatprep.subr.mxu0 0.0
      %498 = vmatpush2.msra.mxu0 0.0
      %499 = vmatprep.subr.mxu0 0.0
      %500 = vmatpush2.msra.mxu0 0.0
      %501 = vmatprep.subr.mxu0 0.0
      %502 = vmatpush2.msra.mxu0 0.0
      %503 = vmatprep.subr.mxu0 0.0
      %504 = vmatpush2.msra.mxu0 0.0
      %505 = vmatprep.subr.mxu0 0.0
      %506 = vmatpush2.msra.mxu0 0.0
      %507 = vmatprep.subr.mxu0 0.0
      %508 = vmatpush2.msra.mxu0 0.0
      %509 = vmatprep.mubr.f32.mxu0 0.0
      %510 = vmatmul.mubr.f32.gmra.mxu0 %v288
      %v511 = vpop.f32.mrf.mxu0
      %v512 = vadd.f32 0.0, %v511
      %v513 = vpop.f32.mrf.mxu0
      %v514 = vadd.f32 0.0, %v513
      %515 = vdwg.mxu0
      %v517 = vsel %vm286, %v253, 0
      %v519 = vsel %vm290, %v250, 0
      %v521 = vsel %vm290, %v265, 0
      %v523 = vsel %vm290, %v251, 0
      %v525 = vsel %vm290, %v266, 0
      %v527 = vsel %vm290, %v252, 0
      %v529 = vsel %vm290, %v267, 0
      %531 = vmatprep.subr.mxu0 0.0
      %532 = vmatpush1.msra.mxu0 0.0
      %533 = vmatprep.subr.mxu0 0.0
      %534 = vmatpush1.msra.mxu0 0.0
      %535 = vmatprep.subr.mxu0 0.0
      %536 = vmatpush1.msra.mxu0 0.0
      %537 = vmatprep.subr.mxu0 0.0
      %538 = vmatpush1.msra.mxu0 0.0
      %539 = vmatprep.subr.mxu0 0.0
      %540 = vmatpush1.msra.mxu0 0.0
      %541 = vmatprep.subr.mxu0 0.0
      %542 = vmatpush1.msra.mxu0 0.0
      %543 = vmatprep.subr.mxu0 0.0
      %544 = vmatpush1.msra.mxu0 0.0
      %545 = vmatprep.subr.mxu0 0.0
      %546 = vmatpush1.msra.mxu0 0.0
      %547 = vmatprep.subr.mxu0 0.0
      %548 = vmatpush1.msra.mxu0 0.0
      %549 = vmatprep.subr.mxu0 0.0
      %550 = vmatpush1.msra.mxu0 0.0
      %551 = vmatprep.subr.mxu0 0.0
      %552 = vmatpush1.msra.mxu0 0.0
      %553 = vmatprep.subr.mxu0 0.0
      %554 = vmatpush1.msra.mxu0 0.0
      %555 = vmatprep.subr.mxu0 0.0
      %556 = vmatpush1.msra.mxu0 0.0
      %557 = vmatprep.subr.mxu0 0.0
      %558 = vmatpush1.msra.mxu0 0.0
      %559 = vmatprep.subr.mxu0 0.0
      %560 = vmatpush1.msra.mxu0 0.0
      %561 = vmatprep.subr.mxu0 %v521
      %562 = vmatpush1.msra.mxu0 %v519
      %563 = vmatprep.subr.mxu0 0.0
      %564 = vmatpush2.msra.mxu0 0.0
      %565 = vmatprep.subr.mxu0 0.0
      %566 = vmatpush2.msra.mxu0 0.0
      %567 = vmatprep.subr.mxu0 0.0
      %568 = vmatpush2.msra.mxu0 0.0
      %569 = vmatprep.subr.mxu0 0.0
      %570 = vmatpush2.msra.mxu0 0.0
      %571 = vmatprep.subr.mxu0 0.0
      %572 = vmatpush2.msra.mxu0 0.0
      %573 = vmatprep.subr.mxu0 0.0
      %574 = vmatpush2.msra.mxu0 0.0
      %575 = vmatprep.subr.mxu0 0.0
      %576 = vmatpush2.msra.mxu0 0.0
      %577 = vmatprep.subr.mxu0 0.0
      %578 = vmatpush2.msra.mxu0 0.0
      %579 = vmatprep.subr.mxu0 0.0
      %580 = vmatpush2.msra.mxu0 0.0
      %581 = vmatprep.subr.mxu0 0.0
      %582 = vmatpush2.msra.mxu0 0.0
      %583 = vmatprep.subr.mxu0 0.0
      %584 = vmatpush2.msra.mxu0 0.0
      %585 = vmatprep.subr.mxu0 0.0
      %586 = vmatpush2.msra.mxu0 0.0
      %587 = vmatprep.subr.mxu0 0.0
      %588 = vmatpush2.msra.mxu0 0.0
      %589 = vmatprep.subr.mxu0 0.0
      %590 = vmatpush2.msra.mxu0 0.0
      %591 = vmatprep.subr.mxu0 0.0
      %592 = vmatpush2.msra.mxu0 0.0
      %593 = vmatprep.subr.mxu0 0.0
      %594 = vmatpush2.msra.mxu0 0.0
      %595 = vmatprep.mubr.f32.mxu0 0.0
      %596 = vmatmul.mubr.f32.gmra.mxu0 %v517
      %v597 = vpop.f32.mrf.mxu0
      %v598 = vadd.f32 %v370, %v597
      %v599 = vpop.f32.mrf.mxu0
      %v600 = vadd.f32 %v372, %v599
      %601 = vdwg.mxu0
      %602 = vmatprep.subr.mxu0 0.0
      %603 = vmatpush1.msra.mxu0 0.0
      %604 = vmatprep.subr.mxu0 0.0
      %605 = vmatpush1.msra.mxu0 0.0
      %606 = vmatprep.subr.mxu0 0.0
      %607 = vmatpush1.msra.mxu0 0.0
      %608 = vmatprep.subr.mxu0 0.0
      %609 = vmatpush1.msra.mxu0 0.0
      %610 = vmatprep.subr.mxu0 0.0
      %611 = vmatpush1.msra.mxu0 0.0
      %612 = vmatprep.subr.mxu0 0.0
      %613 = vmatpush1.msra.mxu0 0.0
      %614 = vmatprep.subr.mxu0 0.0
      %615 = vmatpush1.msra.mxu0 0.0
      %616 = vmatprep.subr.mxu0 0.0
      %617 = vmatpush1.msra.mxu0 0.0
      %618 = vmatprep.subr.mxu0 0.0
      %619 = vmatpush1.msra.mxu0 0.0
      %620 = vmatprep.subr.mxu0 0.0
      %621 = vmatpush1.msra.mxu0 0.0
      %622 = vmatprep.subr.mxu0 0.0
      %623 = vmatpush1.msra.mxu0 0.0
      %624 = vmatprep.subr.mxu0 0.0
      %625 = vmatpush1.msra.mxu0 0.0
      %626 = vmatprep.subr.mxu0 0.0
      %627 = vmatpush1.msra.mxu0 0.0
      %628 = vmatprep.subr.mxu0 0.0
      %629 = vmatpush1.msra.mxu0 0.0
      %630 = vmatprep.subr.mxu0 0.0
      %631 = vmatpush1.msra.mxu0 0.0
      %632 = vmatprep.subr.mxu0 %v525
      %633 = vmatpush1.msra.mxu0 %v523
      %634 = vmatprep.subr.mxu0 0.0
      %635 = vmatpush2.msra.mxu0 0.0
      %636 = vmatprep.subr.mxu0 0.0
      %637 = vmatpush2.msra.mxu0 0.0
      %638 = vmatprep.subr.mxu0 0.0
      %639 = vmatpush2.msra.mxu0 0.0
      %640 = vmatprep.subr.mxu0 0.0
      %641 = vmatpush2.msra.mxu0 0.0
      %642 = vmatprep.subr.mxu0 0.0
      %643 = vmatpush2.msra.mxu0 0.0
      %644 = vmatprep.subr.mxu0 0.0
      %645 = vmatpush2.msra.mxu0 0.0
      %646 = vmatprep.subr.mxu0 0.0
      %647 = vmatpush2.msra.mxu0 0.0
      %648 = vmatprep.subr.mxu0 0.0
      %649 = vmatpush2.msra.mxu0 0.0
      %650 = vmatprep.subr.mxu0 0.0
      %651 = vmatpush2.msra.mxu0 0.0
      %652 = vmatprep.subr.mxu0 0.0
      %653 = vmatpush2.msra.mxu0 0.0
      %654 = vmatprep.subr.mxu0 0.0
      %655 = vmatpush2.msra.mxu0 0.0
      %656 = vmatprep.subr.mxu0 0.0
      %657 = vmatpush2.msra.mxu0 0.0
      %658 = vmatprep.subr.mxu0 0.0
      %659 = vmatpush2.msra.mxu0 0.0
      %660 = vmatprep.subr.mxu0 0.0
      %661 = vmatpush2.msra.mxu0 0.0
      %662 = vmatprep.subr.mxu0 0.0
      %663 = vmatpush2.msra.mxu0 0.0
      %664 = vmatprep.subr.mxu0 0.0
      %665 = vmatpush2.msra.mxu0 0.0
      %666 = vmatprep.mubr.f32.mxu0 0.0
      %667 = vmatmul.mubr.f32.gmra.mxu0 %v517
      %v668 = vpop.f32.mrf.mxu0
      %v669 = vadd.f32 %v441, %v668
      %v670 = vpop.f32.mrf.mxu0
      %v671 = vadd.f32 %v443, %v670
      %672 = vdwg.mxu0
      %673 = vmatprep.subr.mxu0 0.0
      %674 = vmatpush1.msra.mxu0 0.0
      %675 = vmatprep.subr.mxu0 0.0
      %676 = vmatpush1.msra.mxu0 0.0
      %677 = vmatprep.subr.mxu0 0.0
      %678 = vmatpush1.msra.mxu0 0.0
      %679 = vmatprep.subr.mxu0 0.0
      %680 = vmatpush1.msra.mxu0 0.0
      %681 = vmatprep.subr.mxu0 0.0
      %682 = vmatpush1.msra.mxu0 0.0
      %683 = vmatprep.subr.mxu0 0.0
      %684 = vmatpush1.msra.mxu0 0.0
      %685 = vmatprep.subr.mxu0 0.0
      %686 = vmatpush1.msra.mxu0 0.0
      %687 = vmatprep.subr.mxu0 0.0
      %688 = vmatpush1.msra.mxu0 0.0
      %689 = vmatprep.subr.mxu0 0.0
      %690 = vmatpush1.msra.mxu0 0.0
      %691 = vmatprep.subr.mxu0 0.0
      %692 = vmatpush1.msra.mxu0 0.0
      %693 = vmatprep.subr.mxu0 0.0
      %694 = vmatpush1.msra.mxu0 0.0
      %695 = vmatprep.subr.mxu0 0.0
      %696 = vmatpush1.msra.mxu0 0.0
      %697 = vmatprep.subr.mxu0 0.0
      %698 = vmatpush1.msra.mxu0 0.0
      %699 = vmatprep.subr.mxu0 0.0
      %700 = vmatpush1.msra.mxu0 0.0
      %701 = vmatprep.subr.mxu0 0.0
      %702 = vmatpush1.msra.mxu0 0.0
      %703 = vmatprep.subr.mxu0 %v529
      %704 = vmatpush1.msra.mxu0 %v527
      %705 = vmatprep.subr.mxu0 0.0
      %706 = vmatpush2.msra.mxu0 0.0
      %707 = vmatprep.subr.mxu0 0.0
      %708 = vmatpush2.msra.mxu0 0.0
      %709 = vmatprep.subr.mxu0 0.0
      %710 = vmatpush2.msra.mxu0 0.0
      %711 = vmatprep.subr.mxu0 0.0
      %712 = vmatpush2.msra.mxu0 0.0
      %713 = vmatprep.subr.mxu0 0.0
      %714 = vmatpush2.msra.mxu0 0.0
      %715 = vmatprep.subr.mxu0 0.0
      %716 = vmatpush2.msra.mxu0 0.0
      %717 = vmatprep.subr.mxu0 0.0
      %718 = vmatpush2.msra.mxu0 0.0
      %719 = vmatprep.subr.mxu0 0.0
      %720 = vmatpush2.msra.mxu0 0.0
      %721 = vmatprep.subr.mxu0 0.0
      %722 = vmatpush2.msra.mxu0 0.0
      %723 = vmatprep.subr.mxu0 0.0
      %724 = vmatpush2.msra.mxu0 0.0
      %725 = vmatprep.subr.mxu0 0.0
      %726 = vmatpush2.msra.mxu0 0.0
      %727 = vmatprep.subr.mxu0 0.0
      %728 = vmatpush2.msra.mxu0 0.0
      %729 = vmatprep.subr.mxu0 0.0
      %730 = vmatpush2.msra.mxu0 0.0
      %731 = vmatprep.subr.mxu0 0.0
      %732 = vmatpush2.msra.mxu0 0.0
      %733 = vmatprep.subr.mxu0 0.0
      %734 = vmatpush2.msra.mxu0 0.0
      %735 = vmatprep.subr.mxu0 0.0
      %736 = vmatpush2.msra.mxu0 0.0
      %737 = vmatprep.mubr.f32.mxu0 0.0
      %738 = vmatmul.mubr.f32.gmra.mxu0 %v517
      %v739 = vpop.f32.mrf.mxu0
      %v740 = vadd.f32 %v512, %v739
      %v741 = vpop.f32.mrf.mxu0
      %v742 = vadd.f32 %v514, %v741
      %743 = vdwg.mxu0
      %744 = vrot.lane.b32.xlu0 %v250, 126
      %v745 = vpop.permute.xlu0 %744
      %746 = vrot.lane.b32.xlu0 %v265, 126
      %v747 = vpop.permute.xlu0 %746
      %748 = vrot.lane.b32.xlu0 %v251, 126
      %v749 = vpop.permute.xlu0 %748
      %750 = vrot.lane.b32.xlu0 %v266, 126
      %v751 = vpop.permute.xlu0 %750
      %752 = vrot.lane.b32.xlu0 %v252, 126
      %v753 = vpop.permute.xlu0 %752
      %754 = vrot.lane.b32.xlu0 %v267, 126
      %v755 = vpop.permute.xlu0 %754
      %vm756 = vcmask 1031168
      %v757 = vsel %vm756, %v745, %v747
      %v758 = vsel %vm756, %v747, %v749
      %v759 = vsel %vm756, %v749, %v751
      %v760 = vsel %vm756, %v751, %v753
      %v761 = vsel %vm756, %v753, %v755
      %v763 = vsel %vm286, %v255, 0
      %v765 = vsel %vm290, %v757, 0
      %v767 = vsel %vm290, %v758, 0
      %v769 = vsel %vm290, %v759, 0
      %v771 = vsel %vm290, %v760, 0
      %v773 = vsel %vm290, %v761, 0
      %v775 = vsel %vm290, %v755, 0
      %777 = vmatprep.subr.mxu0 0.0
      %778 = vmatpush1.msra.mxu0 0.0
      %779 = vmatprep.subr.mxu0 0.0
      %780 = vmatpush1.msra.mxu0 0.0
      %781 = vmatprep.subr.mxu0 0.0
      %782 = vmatpush1.msra.mxu0 0.0
      %783 = vmatprep.subr.mxu0 0.0
      %784 = vmatpush1.msra.mxu0 0.0
      %785 = vmatprep.subr.mxu0 0.0
      %786 = vmatpush1.msra.mxu0 0.0
      %787 = vmatprep.subr.mxu0 0.0
      %788 = vmatpush1.msra.mxu0 0.0
      %789 = vmatprep.subr.mxu0 0.0
      %790 = vmatpush1.msra.mxu0 0.0
      %791 = vmatprep.subr.mxu0 0.0
      %792 = vmatpush1.msra.mxu0 0.0
      %793 = vmatprep.subr.mxu0 0.0
      %794 = vmatpush1.msra.mxu0 0.0
      %795 = vmatprep.subr.mxu0 0.0
      %796 = vmatpush1.msra.mxu0 0.0
      %797 = vmatprep.subr.mxu0 0.0
      %798 = vmatpush1.msra.mxu0 0.0
      %799 = vmatprep.subr.mxu0 0.0
      %800 = vmatpush1.msra.mxu0 0.0
      %801 = vmatprep.subr.mxu0 0.0
      %802 = vmatpush1.msra.mxu0 0.0
      %803 = vmatprep.subr.mxu0 0.0
      %804 = vmatpush1.msra.mxu0 0.0
      %805 = vmatprep.subr.mxu0 0.0
      %806 = vmatpush1.msra.mxu0 0.0
      %807 = vmatprep.subr.mxu0 %v767
      %808 = vmatpush1.msra.mxu0 %v765
      %809 = vmatprep.subr.mxu0 0.0
      %810 = vmatpush2.msra.mxu0 0.0
      %811 = vmatprep.subr.mxu0 0.0
      %812 = vmatpush2.msra.mxu0 0.0
      %813 = vmatprep.subr.mxu0 0.0
      %814 = vmatpush2.msra.mxu0 0.0
      %815 = vmatprep.subr.mxu0 0.0
      %816 = vmatpush2.msra.mxu0 0.0
      %817 = vmatprep.subr.mxu0 0.0
      %818 = vmatpush2.msra.mxu0 0.0
      %819 = vmatprep.subr.mxu0 0.0
      %820 = vmatpush2.msra.mxu0 0.0
      %821 = vmatprep.subr.mxu0 0.0
      %822 = vmatpush2.msra.mxu0 0.0
      %823 = vmatprep.subr.mxu0 0.0
      %824 = vmatpush2.msra.mxu0 0.0
      %825 = vmatprep.subr.mxu0 0.0
      %826 = vmatpush2.msra.mxu0 0.0
      %827 = vmatprep.subr.mxu0 0.0
      %828 = vmatpush2.msra.mxu0 0.0
      %829 = vmatprep.subr.mxu0 0.0
      %830 = vmatpush2.msra.mxu0 0.0
      %831 = vmatprep.subr.mxu0 0.0
      %832 = vmatpush2.msra.mxu0 0.0
      %833 = vmatprep.subr.mxu0 0.0
      %834 = vmatpush2.msra.mxu0 0.0
      %835 = vmatprep.subr.mxu0 0.0
      %836 = vmatpush2.msra.mxu0 0.0
      %837 = vmatprep.subr.mxu0 0.0
      %838 = vmatpush2.msra.mxu0 0.0
      %839 = vmatprep.subr.mxu0 0.0
      %840 = vmatpush2.msra.mxu0 0.0
      %841 = vmatprep.mubr.f32.mxu0 0.0
      %842 = vmatmul.mubr.f32.gmra.mxu0 %v763
      %v843 = vpop.f32.mrf.mxu0
      %v844 = vadd.f32 0.0, %v843
      %v845 = vpop.f32.mrf.mxu0
      %v846 = vadd.f32 0.0, %v845
      %847 = vdwg.mxu0
      %848 = vmatprep.subr.mxu0 0.0
      %849 = vmatpush1.msra.mxu0 0.0
      %850 = vmatprep.subr.mxu0 0.0
      %851 = vmatpush1.msra.mxu0 0.0
      %852 = vmatprep.subr.mxu0 0.0
      %853 = vmatpush1.msra.mxu0 0.0
      %854 = vmatprep.subr.mxu0 0.0
      %855 = vmatpush1.msra.mxu0 0.0
      %856 = vmatprep.subr.mxu0 0.0
      %857 = vmatpush1.msra.mxu0 0.0
      %858 = vmatprep.subr.mxu0 0.0
      %859 = vmatpush1.msra.mxu0 0.0
      %860 = vmatprep.subr.mxu0 0.0
      %861 = vmatpush1.msra.mxu0 0.0
      %862 = vmatprep.subr.mxu0 0.0
      %863 = vmatpush1.msra.mxu0 0.0
      %864 = vmatprep.subr.mxu0 0.0
      %865 = vmatpush1.msra.mxu0 0.0
      %866 = vmatprep.subr.mxu0 0.0
      %867 = vmatpush1.msra.mxu0 0.0
      %868 = vmatprep.subr.mxu0 0.0
      %869 = vmatpush1.msra.mxu0 0.0
      %870 = vmatprep.subr.mxu0 0.0
      %871 = vmatpush1.msra.mxu0 0.0
      %872 = vmatprep.subr.mxu0 0.0
      %873 = vmatpush1.msra.mxu0 0.0
      %874 = vmatprep.subr.mxu0 0.0
      %875 = vmatpush1.msra.mxu0 0.0
      %876 = vmatprep.subr.mxu0 0.0
      %877 = vmatpush1.msra.mxu0 0.0
      %878 = vmatprep.subr.mxu0 %v771
      %879 = vmatpush1.msra.mxu0 %v769
      %880 = vmatprep.subr.mxu0 0.0
      %881 = vmatpush2.msra.mxu0 0.0
      %882 = vmatprep.subr.mxu0 0.0
      %883 = vmatpush2.msra.mxu0 0.0
      %884 = vmatprep.subr.mxu0 0.0
      %885 = vmatpush2.msra.mxu0 0.0
      %886 = vmatprep.subr.mxu0 0.0
      %887 = vmatpush2.msra.mxu0 0.0
      %888 = vmatprep.subr.mxu0 0.0
      %889 = vmatpush2.msra.mxu0 0.0
      %890 = vmatprep.subr.mxu0 0.0
      %891 = vmatpush2.msra.mxu0 0.0
      %892 = vmatprep.subr.mxu0 0.0
      %893 = vmatpush2.msra.mxu0 0.0
      %894 = vmatprep.subr.mxu0 0.0
      %895 = vmatpush2.msra.mxu0 0.0
      %896 = vmatprep.subr.mxu0 0.0
      %897 = vmatpush2.msra.mxu0 0.0
      %898 = vmatprep.subr.mxu0 0.0
      %899 = vmatpush2.msra.mxu0 0.0
      %900 = vmatprep.subr.mxu0 0.0
      %901 = vmatpush2.msra.mxu0 0.0
      %902 = vmatprep.subr.mxu0 0.0
      %903 = vmatpush2.msra.mxu0 0.0
      %904 = vmatprep.subr.mxu0 0.0
      %905 = vmatpush2.msra.mxu0 0.0
      %906 = vmatprep.subr.mxu0 0.0
      %907 = vmatpush2.msra.mxu0 0.0
      %908 = vmatprep.subr.mxu0 0.0
      %909 = vmatpush2.msra.mxu0 0.0
      %910 = vmatprep.subr.mxu0 0.0
      %911 = vmatpush2.msra.mxu0 0.0
      %912 = vmatprep.mubr.f32.mxu0 0.0
      %913 = vmatmul.mubr.f32.gmra.mxu0 %v763
      %v914 = vpop.f32.mrf.mxu0
      %v915 = vadd.f32 0.0, %v914
      %v916 = vpop.f32.mrf.mxu0
      %v917 = vadd.f32 0.0, %v916
      %918 = vdwg.mxu0
      %919 = vmatprep.subr.mxu0 0.0
      %920 = vmatpush1.msra.mxu0 0.0
      %921 = vmatprep.subr.mxu0 0.0
      %922 = vmatpush1.msra.mxu0 0.0
      %923 = vmatprep.subr.mxu0 0.0
      %924 = vmatpush1.msra.mxu0 0.0
      %925 = vmatprep.subr.mxu0 0.0
      %926 = vmatpush1.msra.mxu0 0.0
      %927 = vmatprep.subr.mxu0 0.0
      %928 = vmatpush1.msra.mxu0 0.0
      %929 = vmatprep.subr.mxu0 0.0
      %930 = vmatpush1.msra.mxu0 0.0
      %931 = vmatprep.subr.mxu0 0.0
      %932 = vmatpush1.msra.mxu0 0.0
      %933 = vmatprep.subr.mxu0 0.0
      %934 = vmatpush1.msra.mxu0 0.0
      %935 = vmatprep.subr.mxu0 0.0
      %936 = vmatpush1.msra.mxu0 0.0
      %937 = vmatprep.subr.mxu0 0.0
      %938 = vmatpush1.msra.mxu0 0.0
      %939 = vmatprep.subr.mxu0 0.0
      %940 = vmatpush1.msra.mxu0 0.0
      %941 = vmatprep.subr.mxu0 0.0
      %942 = vmatpush1.msra.mxu0 0.0
      %943 = vmatprep.subr.mxu0 0.0
      %944 = vmatpush1.msra.mxu0 0.0
      %945 = vmatprep.subr.mxu0 0.0
      %946 = vmatpush1.msra.mxu0 0.0
      %947 = vmatprep.subr.mxu0 0.0
      %948 = vmatpush1.msra.mxu0 0.0
      %949 = vmatprep.subr.mxu0 %v775
      %950 = vmatpush1.msra.mxu0 %v773
      %951 = vmatprep.subr.mxu0 0.0
      %952 = vmatpush2.msra.mxu0 0.0
      %953 = vmatprep.subr.mxu0 0.0
      %954 = vmatpush2.msra.mxu0 0.0
      %955 = vmatprep.subr.mxu0 0.0
      %956 = vmatpush2.msra.mxu0 0.0
      %957 = vmatprep.subr.mxu0 0.0
      %958 = vmatpush2.msra.mxu0 0.0
      %959 = vmatprep.subr.mxu0 0.0
      %960 = vmatpush2.msra.mxu0 0.0
      %961 = vmatprep.subr.mxu0 0.0
      %962 = vmatpush2.msra.mxu0 0.0
      %963 = vmatprep.subr.mxu0 0.0
      %964 = vmatpush2.msra.mxu0 0.0
      %965 = vmatprep.subr.mxu0 0.0
      %966 = vmatpush2.msra.mxu0 0.0
      %967 = vmatprep.subr.mxu0 0.0
      %968 = vmatpush2.msra.mxu0 0.0
      %969 = vmatprep.subr.mxu0 0.0
      %970 = vmatpush2.msra.mxu0 0.0
      %971 = vmatprep.subr.mxu0 0.0
      %972 = vmatpush2.msra.mxu0 0.0
      %973 = vmatprep.subr.mxu0 0.0
      %974 = vmatpush2.msra.mxu0 0.0
      %975 = vmatprep.subr.mxu0 0.0
      %976 = vmatpush2.msra.mxu0 0.0
      %977 = vmatprep.subr.mxu0 0.0
      %978 = vmatpush2.msra.mxu0 0.0
      %979 = vmatprep.subr.mxu0 0.0
      %980 = vmatpush2.msra.mxu0 0.0
      %981 = vmatprep.subr.mxu0 0.0
      %982 = vmatpush2.msra.mxu0 0.0
      %983 = vmatprep.mubr.f32.mxu0 0.0
      %984 = vmatmul.mubr.f32.gmra.mxu0 %v763
      %v985 = vpop.f32.mrf.mxu0
      %v986 = vadd.f32 0.0, %v985
      %v987 = vpop.f32.mrf.mxu0
      %v988 = vadd.f32 0.0, %v987
      %989 = vdwg.mxu0
      %v990 = vadd.f32 %v598, %v844
      %v991 = vadd.f32 %v600, %v846
      %v992 = vadd.f32 %v669, %v915
      %v993 = vadd.f32 %v671, %v917
      %v994 = vadd.f32 %v740, %v986
      %v995 = vadd.f32 %v742, %v988
      %996 = vrot.lane.b32.xlu0 %v250, 110
      %v997 = vpop.permute.xlu0 %996
      %998 = vrot.lane.b32.xlu0 %v265, 110
      %v999 = vpop.permute.xlu0 %998
      %1000 = vrot.lane.b32.xlu0 %v251, 110
      %v1001 = vpop.permute.xlu0 %1000
      %1002 = vrot.lane.b32.xlu0 %v266, 110
      %v1003 = vpop.permute.xlu0 %1002
      %1004 = vrot.lane.b32.xlu0 %v252, 110
      %v1005 = vpop.permute.xlu0 %1004
      %1006 = vrot.lane.b32.xlu0 %v267, 110
      %v1007 = vpop.permute.xlu0 %1006
      %vm1008 = vcmask 900096
      %v1009 = vsel %vm1008, %v997, %v999
      %v1010 = vsel %vm1008, %v999, %v1001
      %v1011 = vsel %vm1008, %v1001, %v1003
      %v1012 = vsel %vm1008, %v1003, %v1005
      %v1013 = vsel %vm1008, %v1005, %v1007
      %v1015 = vsel %vm286, %v256, 0
      %v1017 = vsel %vm290, %v1009, 0
      %v1019 = vsel %vm290, %v1010, 0
      %v1021 = vsel %vm290, %v1011, 0
      %v1023 = vsel %vm290, %v1012, 0
      %v1025 = vsel %vm290, %v1013, 0
      %v1027 = vsel %vm290, %v1007, 0
      %1029 = vmatprep.subr.mxu0 0.0
      %1030 = vmatpush1.msra.mxu0 0.0
      %1031 = vmatprep.subr.mxu0 0.0
      %1032 = vmatpush1.msra.mxu0 0.0
      %1033 = vmatprep.subr.mxu0 0.0
      %1034 = vmatpush1.msra.mxu0 0.0
      %1035 = vmatprep.subr.mxu0 0.0
      %1036 = vmatpush1.msra.mxu0 0.0
      %1037 = vmatprep.subr.mxu0 0.0
      %1038 = vmatpush1.msra.mxu0 0.0
      %1039 = vmatprep.subr.mxu0 0.0
      %1040 = vmatpush1.msra.mxu0 0.0
      %1041 = vmatprep.subr.mxu0 0.0
      %1042 = vmatpush1.msra.mxu0 0.0
      %1043 = vmatprep.subr.mxu0 0.0
      %1044 = vmatpush1.msra.mxu0 0.0
      %1045 = vmatprep.subr.mxu0 0.0
      %1046 = vmatpush1.msra.mxu0 0.0
      %1047 = vmatprep.subr.mxu0 0.0
      %1048 = vmatpush1.msra.mxu0 0.0
      %1049 = vmatprep.subr.mxu0 0.0
      %1050 = vmatpush1.msra.mxu0 0.0
      %1051 = vmatprep.subr.mxu0 0.0
      %1052 = vmatpush1.msra.mxu0 0.0
      %1053 = vmatprep.subr.mxu0 0.0
      %1054 = vmatpush1.msra.mxu0 0.0
      %1055 = vmatprep.subr.mxu0 0.0
      %1056 = vmatpush1.msra.mxu0 0.0
      %1057 = vmatprep.subr.mxu0 0.0
      %1058 = vmatpush1.msra.mxu0 0.0
      %1059 = vmatprep.subr.mxu0 %v1019
      %1060 = vmatpush1.msra.mxu0 %v1017
      %1061 = vmatprep.subr.mxu0 0.0
      %1062 = vmatpush2.msra.mxu0 0.0
      %1063 = vmatprep.subr.mxu0 0.0
      %1064 = vmatpush2.msra.mxu0 0.0
      %1065 = vmatprep.subr.mxu0 0.0
      %1066 = vmatpush2.msra.mxu0 0.0
      %1067 = vmatprep.subr.mxu0 0.0
      %1068 = vmatpush2.msra.mxu0 0.0
      %1069 = vmatprep.subr.mxu0 0.0
      %1070 = vmatpush2.msra.mxu0 0.0
      %1071 = vmatprep.subr.mxu0 0.0
      %1072 = vmatpush2.msra.mxu0 0.0
      %1073 = vmatprep.subr.mxu0 0.0
      %1074 = vmatpush2.msra.mxu0 0.0
      %1075 = vmatprep.subr.mxu0 0.0
      %1076 = vmatpush2.msra.mxu0 0.0
      %1077 = vmatprep.subr.mxu0 0.0
      %1078 = vmatpush2.msra.mxu0 0.0
      %1079 = vmatprep.subr.mxu0 0.0
      %1080 = vmatpush2.msra.mxu0 0.0
      %1081 = vmatprep.subr.mxu0 0.0
      %1082 = vmatpush2.msra.mxu0 0.0
      %1083 = vmatprep.subr.mxu0 0.0
      %1084 = vmatpush2.msra.mxu0 0.0
      %1085 = vmatprep.subr.mxu0 0.0
      %1086 = vmatpush2.msra.mxu0 0.0
      %1087 = vmatprep.subr.mxu0 0.0
      %1088 = vmatpush2.msra.mxu0 0.0
      %1089 = vmatprep.subr.mxu0 0.0
      %1090 = vmatpush2.msra.mxu0 0.0
      %1091 = vmatprep.subr.mxu0 0.0
      %1092 = vmatpush2.msra.mxu0 0.0
      %1093 = vmatprep.mubr.f32.mxu0 0.0
      %1094 = vmatmul.mubr.f32.gmra.mxu0 %v1015
      %v1095 = vpop.f32.mrf.mxu0
      %v1096 = vadd.f32 0.0, %v1095
      %v1097 = vpop.f32.mrf.mxu0
      %v1098 = vadd.f32 0.0, %v1097
      %1099 = vdwg.mxu0
      %1100 = vmatprep.subr.mxu0 0.0
      %1101 = vmatpush1.msra.mxu0 0.0
      %1102 = vmatprep.subr.mxu0 0.0
      %1103 = vmatpush1.msra.mxu0 0.0
      %1104 = vmatprep.subr.mxu0 0.0
      %1105 = vmatpush1.msra.mxu0 0.0
      %1106 = vmatprep.subr.mxu0 0.0
      %1107 = vmatpush1.msra.mxu0 0.0
      %1108 = vmatprep.subr.mxu0 0.0
      %1109 = vmatpush1.msra.mxu0 0.0
      %1110 = vmatprep.subr.mxu0 0.0
      %1111 = vmatpush1.msra.mxu0 0.0
      %1112 = vmatprep.subr.mxu0 0.0
      %1113 = vmatpush1.msra.mxu0 0.0
      %1114 = vmatprep.subr.mxu0 0.0
      %1115 = vmatpush1.msra.mxu0 0.0
      %1116 = vmatprep.subr.mxu0 0.0
      %1117 = vmatpush1.msra.mxu0 0.0
      %1118 = vmatprep.subr.mxu0 0.0
      %1119 = vmatpush1.msra.mxu0 0.0
      %1120 = vmatprep.subr.mxu0 0.0
      %1121 = vmatpush1.msra.mxu0 0.0
      %1122 = vmatprep.subr.mxu0 0.0
      %1123 = vmatpush1.msra.mxu0 0.0
      %1124 = vmatprep.subr.mxu0 0.0
      %1125 = vmatpush1.msra.mxu0 0.0
      %1126 = vmatprep.subr.mxu0 0.0
      %1127 = vmatpush1.msra.mxu0 0.0
      %1128 = vmatprep.subr.mxu0 0.0
      %1129 = vmatpush1.msra.mxu0 0.0
      %1130 = vmatprep.subr.mxu0 %v1023
      %1131 = vmatpush1.msra.mxu0 %v1021
      %1132 = vmatprep.subr.mxu0 0.0
      %1133 = vmatpush2.msra.mxu0 0.0
      %1134 = vmatprep.subr.mxu0 0.0
      %1135 = vmatpush2.msra.mxu0 0.0
      %1136 = vmatprep.subr.mxu0 0.0
      %1137 = vmatpush2.msra.mxu0 0.0
      %1138 = vmatprep.subr.mxu0 0.0
      %1139 = vmatpush2.msra.mxu0 0.0
      %1140 = vmatprep.subr.mxu0 0.0
      %1141 = vmatpush2.msra.mxu0 0.0
      %1142 = vmatprep.subr.mxu0 0.0
      %1143 = vmatpush2.msra.mxu0 0.0
      %1144 = vmatprep.subr.mxu0 0.0
      %1145 = vmatpush2.msra.mxu0 0.0
      %1146 = vmatprep.subr.mxu0 0.0
      %1147 = vmatpush2.msra.mxu0 0.0
      %1148 = vmatprep.subr.mxu0 0.0
      %1149 = vmatpush2.msra.mxu0 0.0
      %1150 = vmatprep.subr.mxu0 0.0
      %1151 = vmatpush2.msra.mxu0 0.0
      %1152 = vmatprep.subr.mxu0 0.0
      %1153 = vmatpush2.msra.mxu0 0.0
      %1154 = vmatprep.subr.mxu0 0.0
      %1155 = vmatpush2.msra.mxu0 0.0
      %1156 = vmatprep.subr.mxu0 0.0
      %1157 = vmatpush2.msra.mxu0 0.0
      %1158 = vmatprep.subr.mxu0 0.0
      %1159 = vmatpush2.msra.mxu0 0.0
      %1160 = vmatprep.subr.mxu0 0.0
      %1161 = vmatpush2.msra.mxu0 0.0
      %1162 = vmatprep.subr.mxu0 0.0
      %1163 = vmatpush2.msra.mxu0 0.0
      %1164 = vmatprep.mubr.f32.mxu0 0.0
      %1165 = vmatmul.mubr.f32.gmra.mxu0 %v1015
      %v1166 = vpop.f32.mrf.mxu0
      %v1167 = vadd.f32 0.0, %v1166
      %v1168 = vpop.f32.mrf.mxu0
      %v1169 = vadd.f32 0.0, %v1168
      %1170 = vdwg.mxu0
      %1171 = vmatprep.subr.mxu0 0.0
      %1172 = vmatpush1.msra.mxu0 0.0
      %1173 = vmatprep.subr.mxu0 0.0
      %1174 = vmatpush1.msra.mxu0 0.0
      %1175 = vmatprep.subr.mxu0 0.0
      %1176 = vmatpush1.msra.mxu0 0.0
      %1177 = vmatprep.subr.mxu0 0.0
      %1178 = vmatpush1.msra.mxu0 0.0
      %1179 = vmatprep.subr.mxu0 0.0
      %1180 = vmatpush1.msra.mxu0 0.0
      %1181 = vmatprep.subr.mxu0 0.0
      %1182 = vmatpush1.msra.mxu0 0.0
      %1183 = vmatprep.subr.mxu0 0.0
      %1184 = vmatpush1.msra.mxu0 0.0
      %1185 = vmatprep.subr.mxu0 0.0
      %1186 = vmatpush1.msra.mxu0 0.0
      %1187 = vmatprep.subr.mxu0 0.0
      %1188 = vmatpush1.msra.mxu0 0.0
      %1189 = vmatprep.subr.mxu0 0.0
      %1190 = vmatpush1.msra.mxu0 0.0
      %1191 = vmatprep.subr.mxu0 0.0
      %1192 = vmatpush1.msra.mxu0 0.0
      %1193 = vmatprep.subr.mxu0 0.0
      %1194 = vmatpush1.msra.mxu0 0.0
      %1195 = vmatprep.subr.mxu0 0.0
      %1196 = vmatpush1.msra.mxu0 0.0
      %1197 = vmatprep.subr.mxu0 0.0
      %1198 = vmatpush1.msra.mxu0 0.0
      %1199 = vmatprep.subr.mxu0 0.0
      %1200 = vmatpush1.msra.mxu0 0.0
      %1201 = vmatprep.subr.mxu0 %v1027
      %1202 = vmatpush1.msra.mxu0 %v1025
      %1203 = vmatprep.subr.mxu0 0.0
      %1204 = vmatpush2.msra.mxu0 0.0
      %1205 = vmatprep.subr.mxu0 0.0
      %1206 = vmatpush2.msra.mxu0 0.0
      %1207 = vmatprep.subr.mxu0 0.0
      %1208 = vmatpush2.msra.mxu0 0.0
      %1209 = vmatprep.subr.mxu0 0.0
      %1210 = vmatpush2.msra.mxu0 0.0
      %1211 = vmatprep.subr.mxu0 0.0
      %1212 = vmatpush2.msra.mxu0 0.0
      %1213 = vmatprep.subr.mxu0 0.0
      %1214 = vmatpush2.msra.mxu0 0.0
      %1215 = vmatprep.subr.mxu0 0.0
      %1216 = vmatpush2.msra.mxu0 0.0
      %1217 = vmatprep.subr.mxu0 0.0
      %1218 = vmatpush2.msra.mxu0 0.0
      %1219 = vmatprep.subr.mxu0 0.0
      %1220 = vmatpush2.msra.mxu0 0.0
      %1221 = vmatprep.subr.mxu0 0.0
      %1222 = vmatpush2.msra.mxu0 0.0
      %1223 = vmatprep.subr.mxu0 0.0
      %1224 = vmatpush2.msra.mxu0 0.0
      %1225 = vmatprep.subr.mxu0 0.0
      %1226 = vmatpush2.msra.mxu0 0.0
      %1227 = vmatprep.subr.mxu0 0.0
      %1228 = vmatpush2.msra.mxu0 0.0
      %1229 = vmatprep.subr.mxu0 0.0
      %1230 = vmatpush2.msra.mxu0 0.0
      %1231 = vmatprep.subr.mxu0 0.0
      %1232 = vmatpush2.msra.mxu0 0.0
      %1233 = vmatprep.subr.mxu0 0.0
      %1234 = vmatpush2.msra.mxu0 0.0
      %1235 = vmatprep.mubr.f32.mxu0 0.0
      %1236 = vmatmul.mubr.f32.gmra.mxu0 %v1015
      %v1237 = vpop.f32.mrf.mxu0
      %v1238 = vadd.f32 0.0, %v1237
      %v1239 = vpop.f32.mrf.mxu0
      %v1240 = vadd.f32 0.0, %v1239
      %1241 = vdwg.mxu0
      %v1242 = vadd.f32 %v990, %v1096
      %v1243 = vadd.f32 %v991, %v1098
      %v1244 = vadd.f32 %v992, %v1167
      %v1245 = vadd.f32 %v993, %v1169
      %v1246 = vadd.f32 %v994, %v1238
      %v1247 = vadd.f32 %v995, %v1240
      %1248 = vrot.lane.b32.xlu0 %v250, 109
      %v1249 = vpop.permute.xlu0 %1248
      %1250 = vrot.lane.b32.xlu0 %v265, 109
      %v1251 = vpop.permute.xlu0 %1250
      %1252 = vrot.lane.b32.xlu0 %v251, 109
      %v1253 = vpop.permute.xlu0 %1252
      %1254 = vrot.lane.b32.xlu0 %v266, 109
      %v1255 = vpop.permute.xlu0 %1254
      %1256 = vrot.lane.b32.xlu0 %v252, 109
      %v1257 = vpop.permute.xlu0 %1256
      %1258 = vrot.lane.b32.xlu0 %v267, 109
      %v1259 = vpop.permute.xlu0 %1258
      %vm1260 = vcmask 891904
      %v1261 = vsel %vm1260, %v1249, %v1251
      %v1262 = vsel %vm1260, %v1251, %v1253
      %v1263 = vsel %vm1260, %v1253, %v1255
      %v1264 = vsel %vm1260, %v1255, %v1257
      %v1265 = vsel %vm1260, %v1257, %v1259
      %v1267 = vsel %vm286, %v257, 0
      %v1269 = vsel %vm290, %v1261, 0
      %v1271 = vsel %vm290, %v1262, 0
      %v1273 = vsel %vm290, %v1263, 0
      %v1275 = vsel %vm290, %v1264, 0
      %v1277 = vsel %vm290, %v1265, 0
      %v1279 = vsel %vm290, %v1259, 0
      %1281 = vmatprep.subr.mxu0 0.0
      %1282 = vmatpush1.msra.mxu0 0.0
      %1283 = vmatprep.subr.mxu0 0.0
      %1284 = vmatpush1.msra.mxu0 0.0
      %1285 = vmatprep.subr.mxu0 0.0
      %1286 = vmatpush1.msra.mxu0 0.0
      %1287 = vmatprep.subr.mxu0 0.0
      %1288 = vmatpush1.msra.mxu0 0.0
      %1289 = vmatprep.subr.mxu0 0.0
      %1290 = vmatpush1.msra.mxu0 0.0
      %1291 = vmatprep.subr.mxu0 0.0
      %1292 = vmatpush1.msra.mxu0 0.0
      %1293 = vmatprep.subr.mxu0 0.0
      %1294 = vmatpush1.msra.mxu0 0.0
      %1295 = vmatprep.subr.mxu0 0.0
      %1296 = vmatpush1.msra.mxu0 0.0
      %1297 = vmatprep.subr.mxu0 0.0
      %1298 = vmatpush1.msra.mxu0 0.0
      %1299 = vmatprep.subr.mxu0 0.0
      %1300 = vmatpush1.msra.mxu0 0.0
      %1301 = vmatprep.subr.mxu0 0.0
      %1302 = vmatpush1.msra.mxu0 0.0
      %1303 = vmatprep.subr.mxu0 0.0
      %1304 = vmatpush1.msra.mxu0 0.0
      %1305 = vmatprep.subr.mxu0 0.0
      %1306 = vmatpush1.msra.mxu0 0.0
      %1307 = vmatprep.subr.mxu0 0.0
      %1308 = vmatpush1.msra.mxu0 0.0
      %1309 = vmatprep.subr.mxu0 0.0
      %1310 = vmatpush1.msra.mxu0 0.0
      %1311 = vmatprep.subr.mxu0 %v1271
      %1312 = vmatpush1.msra.mxu0 %v1269
      %1313 = vmatprep.subr.mxu0 0.0
      %1314 = vmatpush2.msra.mxu0 0.0
      %1315 = vmatprep.subr.mxu0 0.0
      %1316 = vmatpush2.msra.mxu0 0.0
      %1317 = vmatprep.subr.mxu0 0.0
      %1318 = vmatpush2.msra.mxu0 0.0
      %1319 = vmatprep.subr.mxu0 0.0
      %1320 = vmatpush2.msra.mxu0 0.0
      %1321 = vmatprep.subr.mxu0 0.0
      %1322 = vmatpush2.msra.mxu0 0.0
      %1323 = vmatprep.subr.mxu0 0.0
      %1324 = vmatpush2.msra.mxu0 0.0
      %1325 = vmatprep.subr.mxu0 0.0
      %1326 = vmatpush2.msra.mxu0 0.0
      %1327 = vmatprep.subr.mxu0 0.0
      %1328 = vmatpush2.msra.mxu0 0.0
      %1329 = vmatprep.subr.mxu0 0.0
      %1330 = vmatpush2.msra.mxu0 0.0
      %1331 = vmatprep.subr.mxu0 0.0
      %1332 = vmatpush2.msra.mxu0 0.0
      %1333 = vmatprep.subr.mxu0 0.0
      %1334 = vmatpush2.msra.mxu0 0.0
      %1335 = vmatprep.subr.mxu0 0.0
      %1336 = vmatpush2.msra.mxu0 0.0
      %1337 = vmatprep.subr.mxu0 0.0
      %1338 = vmatpush2.msra.mxu0 0.0
      %1339 = vmatprep.subr.mxu0 0.0
      %1340 = vmatpush2.msra.mxu0 0.0
      %1341 = vmatprep.subr.mxu0 0.0
      %1342 = vmatpush2.msra.mxu0 0.0
      %1343 = vmatprep.subr.mxu0 0.0
      %1344 = vmatpush2.msra.mxu0 0.0
      %1345 = vmatprep.mubr.f32.mxu0 0.0
      %1346 = vmatmul.mubr.f32.gmra.mxu0 %v1267
      %v1347 = vpop.f32.mrf.mxu0
      %v1348 = vadd.f32 0.0, %v1347
      %v1349 = vpop.f32.mrf.mxu0
      %v1350 = vadd.f32 0.0, %v1349
      %1351 = vdwg.mxu0
      %1352 = vmatprep.subr.mxu0 0.0
      %1353 = vmatpush1.msra.mxu0 0.0
      %1354 = vmatprep.subr.mxu0 0.0
      %1355 = vmatpush1.msra.mxu0 0.0
      %1356 = vmatprep.subr.mxu0 0.0
      %1357 = vmatpush1.msra.mxu0 0.0
      %1358 = vmatprep.subr.mxu0 0.0
      %1359 = vmatpush1.msra.mxu0 0.0
      %1360 = vmatprep.subr.mxu0 0.0
      %1361 = vmatpush1.msra.mxu0 0.0
      %1362 = vmatprep.subr.mxu0 0.0
      %1363 = vmatpush1.msra.mxu0 0.0
      %1364 = vmatprep.subr.mxu0 0.0
      %1365 = vmatpush1.msra.mxu0 0.0
      %1366 = vmatprep.subr.mxu0 0.0
      %1367 = vmatpush1.msra.mxu0 0.0
      %1368 = vmatprep.subr.mxu0 0.0
      %1369 = vmatpush1.msra.mxu0 0.0
      %1370 = vmatprep.subr.mxu0 0.0
      %1371 = vmatpush1.msra.mxu0 0.0
      %1372 = vmatprep.subr.mxu0 0.0
      %1373 = vmatpush1.msra.mxu0 0.0
      %1374 = vmatprep.subr.mxu0 0.0
      %1375 = vmatpush1.msra.mxu0 0.0
      %1376 = vmatprep.subr.mxu0 0.0
      %1377 = vmatpush1.msra.mxu0 0.0
      %1378 = vmatprep.subr.mxu0 0.0
      %1379 = vmatpush1.msra.mxu0 0.0
      %1380 = vmatprep.subr.mxu0 0.0
      %1381 = vmatpush1.msra.mxu0 0.0
      %1382 = vmatprep.subr.mxu0 %v1275
      %1383 = vmatpush1.msra.mxu0 %v1273
      %1384 = vmatprep.subr.mxu0 0.0
      %1385 = vmatpush2.msra.mxu0 0.0
      %1386 = vmatprep.subr.mxu0 0.0
      %1387 = vmatpush2.msra.mxu0 0.0
      %1388 = vmatprep.subr.mxu0 0.0
      %1389 = vmatpush2.msra.mxu0 0.0
      %1390 = vmatprep.subr.mxu0 0.0
      %1391 = vmatpush2.msra.mxu0 0.0
      %1392 = vmatprep.subr.mxu0 0.0
      %1393 = vmatpush2.msra.mxu0 0.0
      %1394 = vmatprep.subr.mxu0 0.0
      %1395 = vmatpush2.msra.mxu0 0.0
      %1396 = vmatprep.subr.mxu0 0.0
      %1397 = vmatpush2.msra.mxu0 0.0
      %1398 = vmatprep.subr.mxu0 0.0
      %1399 = vmatpush2.msra.mxu0 0.0
      %1400 = vmatprep.subr.mxu0 0.0
      %1401 = vmatpush2.msra.mxu0 0.0
      %1402 = vmatprep.subr.mxu0 0.0
      %1403 = vmatpush2.msra.mxu0 0.0
      %1404 = vmatprep.subr.mxu0 0.0
      %1405 = vmatpush2.msra.mxu0 0.0
      %1406 = vmatprep.subr.mxu0 0.0
      %1407 = vmatpush2.msra.mxu0 0.0
      %1408 = vmatprep.subr.mxu0 0.0
      %1409 = vmatpush2.msra.mxu0 0.0
      %1410 = vmatprep.subr.mxu0 0.0
      %1411 = vmatpush2.msra.mxu0 0.0
      %1412 = vmatprep.subr.mxu0 0.0
      %1413 = vmatpush2.msra.mxu0 0.0
      %1414 = vmatprep.subr.mxu0 0.0
      %1415 = vmatpush2.msra.mxu0 0.0
      %1416 = vmatprep.mubr.f32.mxu0 0.0
      %1417 = vmatmul.mubr.f32.gmra.mxu0 %v1267
      %v1418 = vpop.f32.mrf.mxu0
      %v1419 = vadd.f32 0.0, %v1418
      %v1420 = vpop.f32.mrf.mxu0
      %v1421 = vadd.f32 0.0, %v1420
      %1422 = vdwg.mxu0
      %1423 = vmatprep.subr.mxu0 0.0
      %1424 = vmatpush1.msra.mxu0 0.0
      %1425 = vmatprep.subr.mxu0 0.0
      %1426 = vmatpush1.msra.mxu0 0.0
      %1427 = vmatprep.subr.mxu0 0.0
      %1428 = vmatpush1.msra.mxu0 0.0
      %1429 = vmatprep.subr.mxu0 0.0
      %1430 = vmatpush1.msra.mxu0 0.0
      %1431 = vmatprep.subr.mxu0 0.0
      %1432 = vmatpush1.msra.mxu0 0.0
      %1433 = vmatprep.subr.mxu0 0.0
      %1434 = vmatpush1.msra.mxu0 0.0
      %1435 = vmatprep.subr.mxu0 0.0
      %1436 = vmatpush1.msra.mxu0 0.0
      %1437 = vmatprep.subr.mxu0 0.0
      %1438 = vmatpush1.msra.mxu0 0.0
      %1439 = vmatprep.subr.mxu0 0.0
      %1440 = vmatpush1.msra.mxu0 0.0
      %1441 = vmatprep.subr.mxu0 0.0
      %1442 = vmatpush1.msra.mxu0 0.0
      %1443 = vmatprep.subr.mxu0 0.0
      %1444 = vmatpush1.msra.mxu0 0.0
      %1445 = vmatprep.subr.mxu0 0.0
      %1446 = vmatpush1.msra.mxu0 0.0
      %1447 = vmatprep.subr.mxu0 0.0
      %1448 = vmatpush1.msra.mxu0 0.0
      %1449 = vmatprep.subr.mxu0 0.0
      %1450 = vmatpush1.msra.mxu0 0.0
      %1451 = vmatprep.subr.mxu0 0.0
      %1452 = vmatpush1.msra.mxu0 0.0
      %1453 = vmatprep.subr.mxu0 %v1279
      %1454 = vmatpush1.msra.mxu0 %v1277
      %1455 = vmatprep.subr.mxu0 0.0
      %1456 = vmatpush2.msra.mxu0 0.0
      %1457 = vmatprep.subr.mxu0 0.0
      %1458 = vmatpush2.msra.mxu0 0.0
      %1459 = vmatprep.subr.mxu0 0.0
      %1460 = vmatpush2.msra.mxu0 0.0
      %1461 = vmatprep.subr.mxu0 0.0
      %1462 = vmatpush2.msra.mxu0 0.0
      %1463 = vmatprep.subr.mxu0 0.0
      %1464 = vmatpush2.msra.mxu0 0.0
      %1465 = vmatprep.subr.mxu0 0.0
      %1466 = vmatpush2.msra.mxu0 0.0
      %1467 = vmatprep.subr.mxu0 0.0
      %1468 = vmatpush2.msra.mxu0 0.0
      %1469 = vmatprep.subr.mxu0 0.0
      %1470 = vmatpush2.msra.mxu0 0.0
      %1471 = vmatprep.subr.mxu0 0.0
      %1472 = vmatpush2.msra.mxu0 0.0
      %1473 = vmatprep.subr.mxu0 0.0
      %1474 = vmatpush2.msra.mxu0 0.0
      %1475 = vmatprep.subr.mxu0 0.0
      %1476 = vmatpush2.msra.mxu0 0.0
      %1477 = vmatprep.subr.mxu0 0.0
      %1478 = vmatpush2.msra.mxu0 0.0
      %1479 = vmatprep.subr.mxu0 0.0
      %1480 = vmatpush2.msra.mxu0 0.0
      %1481 = vmatprep.subr.mxu0 0.0
      %1482 = vmatpush2.msra.mxu0 0.0
      %1483 = vmatprep.subr.mxu0 0.0
      %1484 = vmatpush2.msra.mxu0 0.0
      %1485 = vmatprep.subr.mxu0 0.0
      %1486 = vmatpush2.msra.mxu0 0.0
      %1487 = vmatprep.mubr.f32.mxu0 0.0
      %1488 = vmatmul.mubr.f32.gmra.mxu0 %v1267
      %v1489 = vpop.f32.mrf.mxu0
      %v1490 = vadd.f32 0.0, %v1489
      %v1491 = vpop.f32.mrf.mxu0
      %v1492 = vadd.f32 0.0, %v1491
      %1493 = vdwg.mxu0
      %v1494 = vadd.f32 %v1242, %v1348
      %v1495 = vadd.f32 %v1243, %v1350
      %v1496 = vadd.f32 %v1244, %v1419
      %v1497 = vadd.f32 %v1245, %v1421
      %v1498 = vadd.f32 %v1246, %v1490
      %v1499 = vadd.f32 %v1247, %v1492
      %1500 = vrot.lane.b32.xlu0 %v250, 108
      %v1501 = vpop.permute.xlu0 %1500
      %1502 = vrot.lane.b32.xlu0 %v265, 108
      %v1503 = vpop.permute.xlu0 %1502
      %1504 = vrot.lane.b32.xlu0 %v251, 108
      %v1505 = vpop.permute.xlu0 %1504
      %1506 = vrot.lane.b32.xlu0 %v266, 108
      %v1507 = vpop.permute.xlu0 %1506
      %1508 = vrot.lane.b32.xlu0 %v252, 108
      %v1509 = vpop.permute.xlu0 %1508
      %1510 = vrot.lane.b32.xlu0 %v267, 108
      %v1511 = vpop.permute.xlu0 %1510
      %vm1512 = vcmask 883712
      %v1513 = vsel %vm1512, %v1501, %v1503
      %v1514 = vsel %vm1512, %v1503, %v1505
      %v1515 = vsel %vm1512, %v1505, %v1507
      %v1516 = vsel %vm1512, %v1507, %v1509
      %v1517 = vsel %vm1512, %v1509, %v1511
      %v1519 = vsel %vm286, %v258, 0
      %v1521 = vsel %vm290, %v1513, 0
      %v1523 = vsel %vm290, %v1514, 0
      %v1525 = vsel %vm290, %v1515, 0
      %v1527 = vsel %vm290, %v1516, 0
      %v1529 = vsel %vm290, %v1517, 0
      %v1531 = vsel %vm290, %v1511, 0
      %1533 = vmatprep.subr.mxu0 0.0
      %1534 = vmatpush1.msra.mxu0 0.0
      %1535 = vmatprep.subr.mxu0 0.0
      %1536 = vmatpush1.msra.mxu0 0.0
      %1537 = vmatprep.subr.mxu0 0.0
      %1538 = vmatpush1.msra.mxu0 0.0
      %1539 = vmatprep.subr.mxu0 0.0
      %1540 = vmatpush1.msra.mxu0 0.0
      %1541 = vmatprep.subr.mxu0 0.0
      %1542 = vmatpush1.msra.mxu0 0.0
      %1543 = vmatprep.subr.mxu0 0.0
      %1544 = vmatpush1.msra.mxu0 0.0
      %1545 = vmatprep.subr.mxu0 0.0
      %1546 = vmatpush1.msra.mxu0 0.0
      %1547 = vmatprep.subr.mxu0 0.0
      %1548 = vmatpush1.msra.mxu0 0.0
      %1549 = vmatprep.subr.mxu0 0.0
      %1550 = vmatpush1.msra.mxu0 0.0
      %1551 = vmatprep.subr.mxu0 0.0
      %1552 = vmatpush1.msra.mxu0 0.0
      %1553 = vmatprep.subr.mxu0 0.0
      %1554 = vmatpush1.msra.mxu0 0.0
      %1555 = vmatprep.subr.mxu0 0.0
      %1556 = vmatpush1.msra.mxu0 0.0
      %1557 = vmatprep.subr.mxu0 0.0
      %1558 = vmatpush1.msra.mxu0 0.0
      %1559 = vmatprep.subr.mxu0 0.0
      %1560 = vmatpush1.msra.mxu0 0.0
      %1561 = vmatprep.subr.mxu0 0.0
      %1562 = vmatpush1.msra.mxu0 0.0
      %1563 = vmatprep.subr.mxu0 %v1523
      %1564 = vmatpush1.msra.mxu0 %v1521
      %1565 = vmatprep.subr.mxu0 0.0
      %1566 = vmatpush2.msra.mxu0 0.0
      %1567 = vmatprep.subr.mxu0 0.0
      %1568 = vmatpush2.msra.mxu0 0.0
      %1569 = vmatprep.subr.mxu0 0.0
      %1570 = vmatpush2.msra.mxu0 0.0
      %1571 = vmatprep.subr.mxu0 0.0
      %1572 = vmatpush2.msra.mxu0 0.0
      %1573 = vmatprep.subr.mxu0 0.0
      %1574 = vmatpush2.msra.mxu0 0.0
      %1575 = vmatprep.subr.mxu0 0.0
      %1576 = vmatpush2.msra.mxu0 0.0
      %1577 = vmatprep.subr.mxu0 0.0
      %1578 = vmatpush2.msra.mxu0 0.0
      %1579 = vmatprep.subr.mxu0 0.0
      %1580 = vmatpush2.msra.mxu0 0.0
      %1581 = vmatprep.subr.mxu0 0.0
      %1582 = vmatpush2.msra.mxu0 0.0
      %1583 = vmatprep.subr.mxu0 0.0
      %1584 = vmatpush2.msra.mxu0 0.0
      %1585 = vmatprep.subr.mxu0 0.0
      %1586 = vmatpush2.msra.mxu0 0.0
      %1587 = vmatprep.subr.mxu0 0.0
      %1588 = vmatpush2.msra.mxu0 0.0
      %1589 = vmatprep.subr.mxu0 0.0
      %1590 = vmatpush2.msra.mxu0 0.0
      %1591 = vmatprep.subr.mxu0 0.0
      %1592 = vmatpush2.msra.mxu0 0.0
      %1593 = vmatprep.subr.mxu0 0.0
      %1594 = vmatpush2.msra.mxu0 0.0
      %1595 = vmatprep.subr.mxu0 0.0
      %1596 = vmatpush2.msra.mxu0 0.0
      %1597 = vmatprep.mubr.f32.mxu0 0.0
      %1598 = vmatmul.mubr.f32.gmra.mxu0 %v1519
      %v1599 = vpop.f32.mrf.mxu0
      %v1600 = vadd.f32 0.0, %v1599
      %v1601 = vpop.f32.mrf.mxu0
      %v1602 = vadd.f32 0.0, %v1601
      %1603 = vdwg.mxu0
      %1604 = vmatprep.subr.mxu0 0.0
      %1605 = vmatpush1.msra.mxu0 0.0
      %1606 = vmatprep.subr.mxu0 0.0
      %1607 = vmatpush1.msra.mxu0 0.0
      %1608 = vmatprep.subr.mxu0 0.0
      %1609 = vmatpush1.msra.mxu0 0.0
      %1610 = vmatprep.subr.mxu0 0.0
      %1611 = vmatpush1.msra.mxu0 0.0
      %1612 = vmatprep.subr.mxu0 0.0
      %1613 = vmatpush1.msra.mxu0 0.0
      %1614 = vmatprep.subr.mxu0 0.0
      %1615 = vmatpush1.msra.mxu0 0.0
      %1616 = vmatprep.subr.mxu0 0.0
      %1617 = vmatpush1.msra.mxu0 0.0
      %1618 = vmatprep.subr.mxu0 0.0
      %1619 = vmatpush1.msra.mxu0 0.0
      %1620 = vmatprep.subr.mxu0 0.0
      %1621 = vmatpush1.msra.mxu0 0.0
      %1622 = vmatprep.subr.mxu0 0.0
      %1623 = vmatpush1.msra.mxu0 0.0
      %1624 = vmatprep.subr.mxu0 0.0
      %1625 = vmatpush1.msra.mxu0 0.0
      %1626 = vmatprep.subr.mxu0 0.0
      %1627 = vmatpush1.msra.mxu0 0.0
      %1628 = vmatprep.subr.mxu0 0.0
      %1629 = vmatpush1.msra.mxu0 0.0
      %1630 = vmatprep.subr.mxu0 0.0
      %1631 = vmatpush1.msra.mxu0 0.0
      %1632 = vmatprep.subr.mxu0 0.0
      %1633 = vmatpush1.msra.mxu0 0.0
      %1634 = vmatprep.subr.mxu0 %v1527
      %1635 = vmatpush1.msra.mxu0 %v1525
      %1636 = vmatprep.subr.mxu0 0.0
      %1637 = vmatpush2.msra.mxu0 0.0
      %1638 = vmatprep.subr.mxu0 0.0
      %1639 = vmatpush2.msra.mxu0 0.0
      %1640 = vmatprep.subr.mxu0 0.0
      %1641 = vmatpush2.msra.mxu0 0.0
      %1642 = vmatprep.subr.mxu0 0.0
      %1643 = vmatpush2.msra.mxu0 0.0
      %1644 = vmatprep.subr.mxu0 0.0
      %1645 = vmatpush2.msra.mxu0 0.0
      %1646 = vmatprep.subr.mxu0 0.0
      %1647 = vmatpush2.msra.mxu0 0.0
      %1648 = vmatprep.subr.mxu0 0.0
      %1649 = vmatpush2.msra.mxu0 0.0
      %1650 = vmatprep.subr.mxu0 0.0
      %1651 = vmatpush2.msra.mxu0 0.0
      %1652 = vmatprep.subr.mxu0 0.0
      %1653 = vmatpush2.msra.mxu0 0.0
      %1654 = vmatprep.subr.mxu0 0.0
      %1655 = vmatpush2.msra.mxu0 0.0
      %1656 = vmatprep.subr.mxu0 0.0
      %1657 = vmatpush2.msra.mxu0 0.0
      %1658 = vmatprep.subr.mxu0 0.0
      %1659 = vmatpush2.msra.mxu0 0.0
      %1660 = vmatprep.subr.mxu0 0.0
      %1661 = vmatpush2.msra.mxu0 0.0
      %1662 = vmatprep.subr.mxu0 0.0
      %1663 = vmatpush2.msra.mxu0 0.0
      %1664 = vmatprep.subr.mxu0 0.0
      %1665 = vmatpush2.msra.mxu0 0.0
      %1666 = vmatprep.subr.mxu0 0.0
      %1667 = vmatpush2.msra.mxu0 0.0
      %1668 = vmatprep.mubr.f32.mxu0 0.0
      %1669 = vmatmul.mubr.f32.gmra.mxu0 %v1519
      %v1670 = vpop.f32.mrf.mxu0
      %v1671 = vadd.f32 0.0, %v1670
      %v1672 = vpop.f32.mrf.mxu0
      %v1673 = vadd.f32 0.0, %v1672
      %1674 = vdwg.mxu0
      %1675 = vmatprep.subr.mxu0 0.0
      %1676 = vmatpush1.msra.mxu0 0.0
      %1677 = vmatprep.subr.mxu0 0.0
      %1678 = vmatpush1.msra.mxu0 0.0
      %1679 = vmatprep.subr.mxu0 0.0
      %1680 = vmatpush1.msra.mxu0 0.0
      %1681 = vmatprep.subr.mxu0 0.0
      %1682 = vmatpush1.msra.mxu0 0.0
      %1683 = vmatprep.subr.mxu0 0.0
      %1684 = vmatpush1.msra.mxu0 0.0
      %1685 = vmatprep.subr.mxu0 0.0
      %1686 = vmatpush1.msra.mxu0 0.0
      %1687 = vmatprep.subr.mxu0 0.0
      %1688 = vmatpush1.msra.mxu0 0.0
      %1689 = vmatprep.subr.mxu0 0.0
      %1690 = vmatpush1.msra.mxu0 0.0
      %1691 = vmatprep.subr.mxu0 0.0
      %1692 = vmatpush1.msra.mxu0 0.0
      %1693 = vmatprep.subr.mxu0 0.0
      %1694 = vmatpush1.msra.mxu0 0.0
      %1695 = vmatprep.subr.mxu0 0.0
      %1696 = vmatpush1.msra.mxu0 0.0
      %1697 = vmatprep.subr.mxu0 0.0
      %1698 = vmatpush1.msra.mxu0 0.0
      %1699 = vmatprep.subr.mxu0 0.0
      %1700 = vmatpush1.msra.mxu0 0.0
      %1701 = vmatprep.subr.mxu0 0.0
      %1702 = vmatpush1.msra.mxu0 0.0
      %1703 = vmatprep.subr.mxu0 0.0
      %1704 = vmatpush1.msra.mxu0 0.0
      %1705 = vmatprep.subr.mxu0 %v1531
      %1706 = vmatpush1.msra.mxu0 %v1529
      %1707 = vmatprep.subr.mxu0 0.0
      %1708 = vmatpush2.msra.mxu0 0.0
      %1709 = vmatprep.subr.mxu0 0.0
      %1710 = vmatpush2.msra.mxu0 0.0
      %1711 = vmatprep.subr.mxu0 0.0
      %1712 = vmatpush2.msra.mxu0 0.0
      %1713 = vmatprep.subr.mxu0 0.0
      %1714 = vmatpush2.msra.mxu0 0.0
      %1715 = vmatprep.subr.mxu0 0.0
      %1716 = vmatpush2.msra.mxu0 0.0
      %1717 = vmatprep.subr.mxu0 0.0
      %1718 = vmatpush2.msra.mxu0 0.0
      %1719 = vmatprep.subr.mxu0 0.0
      %1720 = vmatpush2.msra.mxu0 0.0
      %1721 = vmatprep.subr.mxu0 0.0
      %1722 = vmatpush2.msra.mxu0 0.0
      %1723 = vmatprep.subr.mxu0 0.0
      %1724 = vmatpush2.msra.mxu0 0.0
      %1725 = vmatprep.subr.mxu0 0.0
      %1726 = vmatpush2.msra.mxu0 0.0
      %1727 = vmatprep.subr.mxu0 0.0
      %1728 = vmatpush2.msra.mxu0 0.0
      %1729 = vmatprep.subr.mxu0 0.0
      %1730 = vmatpush2.msra.mxu0 0.0
      %1731 = vmatprep.subr.mxu0 0.0
      %1732 = vmatpush2.msra.mxu0 0.0
      %1733 = vmatprep.subr.mxu0 0.0
      %1734 = vmatpush2.msra.mxu0 0.0
      %1735 = vmatprep.subr.mxu0 0.0
      %1736 = vmatpush2.msra.mxu0 0.0
      %1737 = vmatprep.subr.mxu0 0.0
      %1738 = vmatpush2.msra.mxu0 0.0
      %1739 = vmatprep.mubr.f32.mxu0 0.0
      %1740 = vmatmul.mubr.f32.gmra.mxu0 %v1519
      %v1741 = vpop.f32.mrf.mxu0
      %v1742 = vadd.f32 0.0, %v1741
      %v1743 = vpop.f32.mrf.mxu0
      %v1744 = vadd.f32 0.0, %v1743
      %1745 = vdwg.mxu0
      %v1746 = vadd.f32 %v1494, %v1600
      %v1747 = vadd.f32 %v1495, %v1602
      %v1748 = vadd.f32 %v1496, %v1671
      %v1749 = vadd.f32 %v1497, %v1673
      %v1750 = vadd.f32 %v1498, %v1742
      %v1751 = vadd.f32 %v1499, %v1744
      %1752 = vrot.lane.b32.xlu0 %v250, 92
      %v1753 = vpop.permute.xlu0 %1752
      %1754 = vrot.lane.b32.xlu0 %v265, 92
      %v1755 = vpop.permute.xlu0 %1754
      %1756 = vrot.lane.b32.xlu0 %v251, 92
      %v1757 = vpop.permute.xlu0 %1756
      %1758 = vrot.lane.b32.xlu0 %v266, 92
      %v1759 = vpop.permute.xlu0 %1758
      %1760 = vrot.lane.b32.xlu0 %v252, 92
      %v1761 = vpop.permute.xlu0 %1760
      %1762 = vrot.lane.b32.xlu0 %v267, 92
      %v1763 = vpop.permute.xlu0 %1762
      %vm1764 = vcmask 752640
      %v1765 = vsel %vm1764, %v1753, %v1755
      %v1766 = vsel %vm1764, %v1755, %v1757
      %v1767 = vsel %vm1764, %v1757, %v1759
      %v1768 = vsel %vm1764, %v1759, %v1761
      %v1769 = vsel %vm1764, %v1761, %v1763
      %v1771 = vsel %vm286, %v259, 0
      %v1773 = vsel %vm290, %v1765, 0
      %v1775 = vsel %vm290, %v1766, 0
      %v1777 = vsel %vm290, %v1767, 0
      %v1779 = vsel %vm290, %v1768, 0
      %v1781 = vsel %vm290, %v1769, 0
      %v1783 = vsel %vm290, %v1763, 0
      %1785 = vmatprep.subr.mxu0 0.0
      %1786 = vmatpush1.msra.mxu0 0.0
      %1787 = vmatprep.subr.mxu0 0.0
      %1788 = vmatpush1.msra.mxu0 0.0
      %1789 = vmatprep.subr.mxu0 0.0
      %1790 = vmatpush1.msra.mxu0 0.0
      %1791 = vmatprep.subr.mxu0 0.0
      %1792 = vmatpush1.msra.mxu0 0.0
      %1793 = vmatprep.subr.mxu0 0.0
      %1794 = vmatpush1.msra.mxu0 0.0
      %1795 = vmatprep.subr.mxu0 0.0
      %1796 = vmatpush1.msra.mxu0 0.0
      %1797 = vmatprep.subr.mxu0 0.0
      %1798 = vmatpush1.msra.mxu0 0.0
      %1799 = vmatprep.subr.mxu0 0.0
      %1800 = vmatpush1.msra.mxu0 0.0
      %1801 = vmatprep.subr.mxu0 0.0
      %1802 = vmatpush1.msra.mxu0 0.0
      %1803 = vmatprep.subr.mxu0 0.0
      %1804 = vmatpush1.msra.mxu0 0.0
      %1805 = vmatprep.subr.mxu0 0.0
      %1806 = vmatpush1.msra.mxu0 0.0
      %1807 = vmatprep.subr.mxu0 0.0
      %1808 = vmatpush1.msra.mxu0 0.0
      %1809 = vmatprep.subr.mxu0 0.0
      %1810 = vmatpush1.msra.mxu0 0.0
      %1811 = vmatprep.subr.mxu0 0.0
      %1812 = vmatpush1.msra.mxu0 0.0
      %1813 = vmatprep.subr.mxu0 0.0
      %1814 = vmatpush1.msra.mxu0 0.0
      %1815 = vmatprep.subr.mxu0 %v1775
      %1816 = vmatpush1.msra.mxu0 %v1773
      %1817 = vmatprep.subr.mxu0 0.0
      %1818 = vmatpush2.msra.mxu0 0.0
      %1819 = vmatprep.subr.mxu0 0.0
      %1820 = vmatpush2.msra.mxu0 0.0
      %1821 = vmatprep.subr.mxu0 0.0
      %1822 = vmatpush2.msra.mxu0 0.0
      %1823 = vmatprep.subr.mxu0 0.0
      %1824 = vmatpush2.msra.mxu0 0.0
      %1825 = vmatprep.subr.mxu0 0.0
      %1826 = vmatpush2.msra.mxu0 0.0
      %1827 = vmatprep.subr.mxu0 0.0
      %1828 = vmatpush2.msra.mxu0 0.0
      %1829 = vmatprep.subr.mxu0 0.0
      %1830 = vmatpush2.msra.mxu0 0.0
      %1831 = vmatprep.subr.mxu0 0.0
      %1832 = vmatpush2.msra.mxu0 0.0
      %1833 = vmatprep.subr.mxu0 0.0
      %1834 = vmatpush2.msra.mxu0 0.0
      %1835 = vmatprep.subr.mxu0 0.0
      %1836 = vmatpush2.msra.mxu0 0.0
      %1837 = vmatprep.subr.mxu0 0.0
      %1838 = vmatpush2.msra.mxu0 0.0
      %1839 = vmatprep.subr.mxu0 0.0
      %1840 = vmatpush2.msra.mxu0 0.0
      %1841 = vmatprep.subr.mxu0 0.0
      %1842 = vmatpush2.msra.mxu0 0.0
      %1843 = vmatprep.subr.mxu0 0.0
      %1844 = vmatpush2.msra.mxu0 0.0
      %1845 = vmatprep.subr.mxu0 0.0
      %1846 = vmatpush2.msra.mxu0 0.0
      %1847 = vmatprep.subr.mxu0 0.0
      %1848 = vmatpush2.msra.mxu0 0.0
      %1849 = vmatprep.mubr.f32.mxu0 0.0
      %1850 = vmatmul.mubr.f32.gmra.mxu0 %v1771
      %v1851 = vpop.f32.mrf.mxu0
      %v1852 = vadd.f32 0.0, %v1851
      %v1853 = vpop.f32.mrf.mxu0
      %v1854 = vadd.f32 0.0, %v1853
      %1855 = vdwg.mxu0
      %1856 = vmatprep.subr.mxu0 0.0
      %1857 = vmatpush1.msra.mxu0 0.0
      %1858 = vmatprep.subr.mxu0 0.0
      %1859 = vmatpush1.msra.mxu0 0.0
      %1860 = vmatprep.subr.mxu0 0.0
      %1861 = vmatpush1.msra.mxu0 0.0
      %1862 = vmatprep.subr.mxu0 0.0
      %1863 = vmatpush1.msra.mxu0 0.0
      %1864 = vmatprep.subr.mxu0 0.0
      %1865 = vmatpush1.msra.mxu0 0.0
      %1866 = vmatprep.subr.mxu0 0.0
      %1867 = vmatpush1.msra.mxu0 0.0
      %1868 = vmatprep.subr.mxu0 0.0
      %1869 = vmatpush1.msra.mxu0 0.0
      %1870 = vmatprep.subr.mxu0 0.0
      %1871 = vmatpush1.msra.mxu0 0.0
      %1872 = vmatprep.subr.mxu0 0.0
      %1873 = vmatpush1.msra.mxu0 0.0
      %1874 = vmatprep.subr.mxu0 0.0
      %1875 = vmatpush1.msra.mxu0 0.0
      %1876 = vmatprep.subr.mxu0 0.0
      %1877 = vmatpush1.msra.mxu0 0.0
      %1878 = vmatprep.subr.mxu0 0.0
      %1879 = vmatpush1.msra.mxu0 0.0
      %1880 = vmatprep.subr.mxu0 0.0
      %1881 = vmatpush1.msra.mxu0 0.0
      %1882 = vmatprep.subr.mxu0 0.0
      %1883 = vmatpush1.msra.mxu0 0.0
      %1884 = vmatprep.subr.mxu0 0.0
      %1885 = vmatpush1.msra.mxu0 0.0
      %1886 = vmatprep.subr.mxu0 %v1779
      %1887 = vmatpush1.msra.mxu0 %v1777
      %1888 = vmatprep.subr.mxu0 0.0
      %1889 = vmatpush2.msra.mxu0 0.0
      %1890 = vmatprep.subr.mxu0 0.0
      %1891 = vmatpush2.msra.mxu0 0.0
      %1892 = vmatprep.subr.mxu0 0.0
      %1893 = vmatpush2.msra.mxu0 0.0
      %1894 = vmatprep.subr.mxu0 0.0
      %1895 = vmatpush2.msra.mxu0 0.0
      %1896 = vmatprep.subr.mxu0 0.0
      %1897 = vmatpush2.msra.mxu0 0.0
      %1898 = vmatprep.subr.mxu0 0.0
      %1899 = vmatpush2.msra.mxu0 0.0
      %1900 = vmatprep.subr.mxu0 0.0
      %1901 = vmatpush2.msra.mxu0 0.0
      %1902 = vmatprep.subr.mxu0 0.0
      %1903 = vmatpush2.msra.mxu0 0.0
      %1904 = vmatprep.subr.mxu0 0.0
      %1905 = vmatpush2.msra.mxu0 0.0
      %1906 = vmatprep.subr.mxu0 0.0
      %1907 = vmatpush2.msra.mxu0 0.0
      %1908 = vmatprep.subr.mxu0 0.0
      %1909 = vmatpush2.msra.mxu0 0.0
      %1910 = vmatprep.subr.mxu0 0.0
      %1911 = vmatpush2.msra.mxu0 0.0
      %1912 = vmatprep.subr.mxu0 0.0
      %1913 = vmatpush2.msra.mxu0 0.0
      %1914 = vmatprep.subr.mxu0 0.0
      %1915 = vmatpush2.msra.mxu0 0.0
      %1916 = vmatprep.subr.mxu0 0.0
      %1917 = vmatpush2.msra.mxu0 0.0
      %1918 = vmatprep.subr.mxu0 0.0
      %1919 = vmatpush2.msra.mxu0 0.0
      %1920 = vmatprep.mubr.f32.mxu0 0.0
      %1921 = vmatmul.mubr.f32.gmra.mxu0 %v1771
      %v1922 = vpop.f32.mrf.mxu0
      %v1923 = vadd.f32 0.0, %v1922
      %v1924 = vpop.f32.mrf.mxu0
      %v1925 = vadd.f32 0.0, %v1924
      %1926 = vdwg.mxu0
      %1927 = vmatprep.subr.mxu0 0.0
      %1928 = vmatpush1.msra.mxu0 0.0
      %1929 = vmatprep.subr.mxu0 0.0
      %1930 = vmatpush1.msra.mxu0 0.0
      %1931 = vmatprep.subr.mxu0 0.0
      %1932 = vmatpush1.msra.mxu0 0.0
      %1933 = vmatprep.subr.mxu0 0.0
      %1934 = vmatpush1.msra.mxu0 0.0
      %1935 = vmatprep.subr.mxu0 0.0
      %1936 = vmatpush1.msra.mxu0 0.0
      %1937 = vmatprep.subr.mxu0 0.0
      %1938 = vmatpush1.msra.mxu0 0.0
      %1939 = vmatprep.subr.mxu0 0.0
      %1940 = vmatpush1.msra.mxu0 0.0
      %1941 = vmatprep.subr.mxu0 0.0
      %1942 = vmatpush1.msra.mxu0 0.0
      %1943 = vmatprep.subr.mxu0 0.0
      %1944 = vmatpush1.msra.mxu0 0.0
      %1945 = vmatprep.subr.mxu0 0.0
      %1946 = vmatpush1.msra.mxu0 0.0
      %1947 = vmatprep.subr.mxu0 0.0
      %1948 = vmatpush1.msra.mxu0 0.0
      %1949 = vmatprep.subr.mxu0 0.0
      %1950 = vmatpush1.msra.mxu0 0.0
      %1951 = vmatprep.subr.mxu0 0.0
      %1952 = vmatpush1.msra.mxu0 0.0
      %1953 = vmatprep.subr.mxu0 0.0
      %1954 = vmatpush1.msra.mxu0 0.0
      %1955 = vmatprep.subr.mxu0 0.0
      %1956 = vmatpush1.msra.mxu0 0.0
      %1957 = vmatprep.subr.mxu0 %v1783
      %1958 = vmatpush1.msra.mxu0 %v1781
      %1959 = vmatprep.subr.mxu0 0.0
      %1960 = vmatpush2.msra.mxu0 0.0
      %1961 = vmatprep.subr.mxu0 0.0
      %1962 = vmatpush2.msra.mxu0 0.0
      %1963 = vmatprep.subr.mxu0 0.0
      %1964 = vmatpush2.msra.mxu0 0.0
      %1965 = vmatprep.subr.mxu0 0.0
      %1966 = vmatpush2.msra.mxu0 0.0
      %1967 = vmatprep.subr.mxu0 0.0
      %1968 = vmatpush2.msra.mxu0 0.0
      %1969 = vmatprep.subr.mxu0 0.0
      %1970 = vmatpush2.msra.mxu0 0.0
      %1971 = vmatprep.subr.mxu0 0.0
      %1972 = vmatpush2.msra.mxu0 0.0
      %1973 = vmatprep.subr.mxu0 0.0
      %1974 = vmatpush2.msra.mxu0 0.0
      %1975 = vmatprep.subr.mxu0 0.0
      %1976 = vmatpush2.msra.mxu0 0.0
      %1977 = vmatprep.subr.mxu0 0.0
      %1978 = vmatpush2.msra.mxu0 0.0
      %1979 = vmatprep.subr.mxu0 0.0
      %1980 = vmatpush2.msra.mxu0 0.0
      %1981 = vmatprep.subr.mxu0 0.0
      %1982 = vmatpush2.msra.mxu0 0.0
      %1983 = vmatprep.subr.mxu0 0.0
      %1984 = vmatpush2.msra.mxu0 0.0
      %1985 = vmatprep.subr.mxu0 0.0
      %1986 = vmatpush2.msra.mxu0 0.0
      %1987 = vmatprep.subr.mxu0 0.0
      %1988 = vmatpush2.msra.mxu0 0.0
      %1989 = vmatprep.subr.mxu0 0.0
      %1990 = vmatpush2.msra.mxu0 0.0
      %1991 = vmatprep.mubr.f32.mxu0 0.0
      %1992 = vmatmul.mubr.f32.gmra.mxu0 %v1771
      %v1993 = vpop.f32.mrf.mxu0
      %v1994 = vadd.f32 0.0, %v1993
      %v1995 = vpop.f32.mrf.mxu0
      %v1996 = vadd.f32 0.0, %v1995
      %1997 = vdwg.mxu0
      %v1998 = vadd.f32 %v1746, %v1852
      %v1999 = vadd.f32 %v1747, %v1854
      %v2000 = vadd.f32 %v1748, %v1923
      %v2001 = vadd.f32 %v1749, %v1925
      %v2002 = vadd.f32 %v1750, %v1994
      %v2003 = vadd.f32 %v1751, %v1996
      %2004 = vrot.lane.b32.xlu0 %v250, 91
      %v2005 = vpop.permute.xlu0 %2004
      %2006 = vrot.lane.b32.xlu0 %v265, 91
      %v2007 = vpop.permute.xlu0 %2006
      %2008 = vrot.lane.b32.xlu0 %v251, 91
      %v2009 = vpop.permute.xlu0 %2008
      %2010 = vrot.lane.b32.xlu0 %v266, 91
      %v2011 = vpop.permute.xlu0 %2010
      %2012 = vrot.lane.b32.xlu0 %v252, 91
      %v2013 = vpop.permute.xlu0 %2012
      %2014 = vrot.lane.b32.xlu0 %v267, 91
      %v2015 = vpop.permute.xlu0 %2014
      %vm2016 = vcmask 744448
      %v2017 = vsel %vm2016, %v2005, %v2007
      %v2018 = vsel %vm2016, %v2007, %v2009
      %v2019 = vsel %vm2016, %v2009, %v2011
      %v2020 = vsel %vm2016, %v2011, %v2013
      %v2021 = vsel %vm2016, %v2013, %v2015
      %v2023 = vsel %vm286, %v260, 0
      %v2025 = vsel %vm290, %v2017, 0
      %v2027 = vsel %vm290, %v2018, 0
      %v2029 = vsel %vm290, %v2019, 0
      %v2031 = vsel %vm290, %v2020, 0
      %v2033 = vsel %vm290, %v2021, 0
      %v2035 = vsel %vm290, %v2015, 0
      %2037 = vmatprep.subr.mxu0 0.0
      %2038 = vmatpush1.msra.mxu0 0.0
      %2039 = vmatprep.subr.mxu0 0.0
      %2040 = vmatpush1.msra.mxu0 0.0
      %2041 = vmatprep.subr.mxu0 0.0
      %2042 = vmatpush1.msra.mxu0 0.0
      %2043 = vmatprep.subr.mxu0 0.0
      %2044 = vmatpush1.msra.mxu0 0.0
      %2045 = vmatprep.subr.mxu0 0.0
      %2046 = vmatpush1.msra.mxu0 0.0
      %2047 = vmatprep.subr.mxu0 0.0
      %2048 = vmatpush1.msra.mxu0 0.0
      %2049 = vmatprep.subr.mxu0 0.0
      %2050 = vmatpush1.msra.mxu0 0.0
      %2051 = vmatprep.subr.mxu0 0.0
      %2052 = vmatpush1.msra.mxu0 0.0
      %2053 = vmatprep.subr.mxu0 0.0
      %2054 = vmatpush1.msra.mxu0 0.0
      %2055 = vmatprep.subr.mxu0 0.0
      %2056 = vmatpush1.msra.mxu0 0.0
      %2057 = vmatprep.subr.mxu0 0.0
      %2058 = vmatpush1.msra.mxu0 0.0
      %2059 = vmatprep.subr.mxu0 0.0
      %2060 = vmatpush1.msra.mxu0 0.0
      %2061 = vmatprep.subr.mxu0 0.0
      %2062 = vmatpush1.msra.mxu0 0.0
      %2063 = vmatprep.subr.mxu0 0.0
      %2064 = vmatpush1.msra.mxu0 0.0
      %2065 = vmatprep.subr.mxu0 0.0
      %2066 = vmatpush1.msra.mxu0 0.0
      %2067 = vmatprep.subr.mxu0 %v2027
      %2068 = vmatpush1.msra.mxu0 %v2025
      %2069 = vmatprep.subr.mxu0 0.0
      %2070 = vmatpush2.msra.mxu0 0.0
      %2071 = vmatprep.subr.mxu0 0.0
      %2072 = vmatpush2.msra.mxu0 0.0
      %2073 = vmatprep.subr.mxu0 0.0
      %2074 = vmatpush2.msra.mxu0 0.0
      %2075 = vmatprep.subr.mxu0 0.0
      %2076 = vmatpush2.msra.mxu0 0.0
      %2077 = vmatprep.subr.mxu0 0.0
      %2078 = vmatpush2.msra.mxu0 0.0
      %2079 = vmatprep.subr.mxu0 0.0
      %2080 = vmatpush2.msra.mxu0 0.0
      %2081 = vmatprep.subr.mxu0 0.0
      %2082 = vmatpush2.msra.mxu0 0.0
      %2083 = vmatprep.subr.mxu0 0.0
      %2084 = vmatpush2.msra.mxu0 0.0
      %2085 = vmatprep.subr.mxu0 0.0
      %2086 = vmatpush2.msra.mxu0 0.0
      %2087 = vmatprep.subr.mxu0 0.0
      %2088 = vmatpush2.msra.mxu0 0.0
      %2089 = vmatprep.subr.mxu0 0.0
      %2090 = vmatpush2.msra.mxu0 0.0
      %2091 = vmatprep.subr.mxu0 0.0
      %2092 = vmatpush2.msra.mxu0 0.0
      %2093 = vmatprep.subr.mxu0 0.0
      %2094 = vmatpush2.msra.mxu0 0.0
      %2095 = vmatprep.subr.mxu0 0.0
      %2096 = vmatpush2.msra.mxu0 0.0
      %2097 = vmatprep.subr.mxu0 0.0
      %2098 = vmatpush2.msra.mxu0 0.0
      %2099 = vmatprep.subr.mxu0 0.0
      %2100 = vmatpush2.msra.mxu0 0.0
      %2101 = vmatprep.mubr.f32.mxu0 0.0
      %2102 = vmatmul.mubr.f32.gmra.mxu0 %v2023
      %v2103 = vpop.f32.mrf.mxu0
      %v2104 = vadd.f32 0.0, %v2103
      %v2105 = vpop.f32.mrf.mxu0
      %v2106 = vadd.f32 0.0, %v2105
      %2107 = vdwg.mxu0
      %2108 = vmatprep.subr.mxu0 0.0
      %2109 = vmatpush1.msra.mxu0 0.0
      %2110 = vmatprep.subr.mxu0 0.0
      %2111 = vmatpush1.msra.mxu0 0.0
      %2112 = vmatprep.subr.mxu0 0.0
      %2113 = vmatpush1.msra.mxu0 0.0
      %2114 = vmatprep.subr.mxu0 0.0
      %2115 = vmatpush1.msra.mxu0 0.0
      %2116 = vmatprep.subr.mxu0 0.0
      %2117 = vmatpush1.msra.mxu0 0.0
      %2118 = vmatprep.subr.mxu0 0.0
      %2119 = vmatpush1.msra.mxu0 0.0
      %2120 = vmatprep.subr.mxu0 0.0
      %2121 = vmatpush1.msra.mxu0 0.0
      %2122 = vmatprep.subr.mxu0 0.0
      %2123 = vmatpush1.msra.mxu0 0.0
      %2124 = vmatprep.subr.mxu0 0.0
      %2125 = vmatpush1.msra.mxu0 0.0
      %2126 = vmatprep.subr.mxu0 0.0
      %2127 = vmatpush1.msra.mxu0 0.0
      %2128 = vmatprep.subr.mxu0 0.0
      %2129 = vmatpush1.msra.mxu0 0.0
      %2130 = vmatprep.subr.mxu0 0.0
      %2131 = vmatpush1.msra.mxu0 0.0
      %2132 = vmatprep.subr.mxu0 0.0
      %2133 = vmatpush1.msra.mxu0 0.0
      %2134 = vmatprep.subr.mxu0 0.0
      %2135 = vmatpush1.msra.mxu0 0.0
      %2136 = vmatprep.subr.mxu0 0.0
      %2137 = vmatpush1.msra.mxu0 0.0
      %2138 = vmatprep.subr.mxu0 %v2031
      %2139 = vmatpush1.msra.mxu0 %v2029
      %2140 = vmatprep.subr.mxu0 0.0
      %2141 = vmatpush2.msra.mxu0 0.0
      %2142 = vmatprep.subr.mxu0 0.0
      %2143 = vmatpush2.msra.mxu0 0.0
      %2144 = vmatprep.subr.mxu0 0.0
      %2145 = vmatpush2.msra.mxu0 0.0
      %2146 = vmatprep.subr.mxu0 0.0
      %2147 = vmatpush2.msra.mxu0 0.0
      %2148 = vmatprep.subr.mxu0 0.0
      %2149 = vmatpush2.msra.mxu0 0.0
      %2150 = vmatprep.subr.mxu0 0.0
      %2151 = vmatpush2.msra.mxu0 0.0
      %2152 = vmatprep.subr.mxu0 0.0
      %2153 = vmatpush2.msra.mxu0 0.0
      %2154 = vmatprep.subr.mxu0 0.0
      %2155 = vmatpush2.msra.mxu0 0.0
      %2156 = vmatprep.subr.mxu0 0.0
      %2157 = vmatpush2.msra.mxu0 0.0
      %2158 = vmatprep.subr.mxu0 0.0
      %2159 = vmatpush2.msra.mxu0 0.0
      %2160 = vmatprep.subr.mxu0 0.0
      %2161 = vmatpush2.msra.mxu0 0.0
      %2162 = vmatprep.subr.mxu0 0.0
      %2163 = vmatpush2.msra.mxu0 0.0
      %2164 = vmatprep.subr.mxu0 0.0
      %2165 = vmatpush2.msra.mxu0 0.0
      %2166 = vmatprep.subr.mxu0 0.0
      %2167 = vmatpush2.msra.mxu0 0.0
      %2168 = vmatprep.subr.mxu0 0.0
      %2169 = vmatpush2.msra.mxu0 0.0
      %2170 = vmatprep.subr.mxu0 0.0
      %2171 = vmatpush2.msra.mxu0 0.0
      %2172 = vmatprep.mubr.f32.mxu0 0.0
      %2173 = vmatmul.mubr.f32.gmra.mxu0 %v2023
      %v2174 = vpop.f32.mrf.mxu0
      %v2175 = vadd.f32 0.0, %v2174
      %v2176 = vpop.f32.mrf.mxu0
      %v2177 = vadd.f32 0.0, %v2176
      %2178 = vdwg.mxu0
      %2179 = vmatprep.subr.mxu0 0.0
      %2180 = vmatpush1.msra.mxu0 0.0
      %2181 = vmatprep.subr.mxu0 0.0
      %2182 = vmatpush1.msra.mxu0 0.0
      %2183 = vmatprep.subr.mxu0 0.0
      %2184 = vmatpush1.msra.mxu0 0.0
      %2185 = vmatprep.subr.mxu0 0.0
      %2186 = vmatpush1.msra.mxu0 0.0
      %2187 = vmatprep.subr.mxu0 0.0
      %2188 = vmatpush1.msra.mxu0 0.0
      %2189 = vmatprep.subr.mxu0 0.0
      %2190 = vmatpush1.msra.mxu0 0.0
      %2191 = vmatprep.subr.mxu0 0.0
      %2192 = vmatpush1.msra.mxu0 0.0
      %2193 = vmatprep.subr.mxu0 0.0
      %2194 = vmatpush1.msra.mxu0 0.0
      %2195 = vmatprep.subr.mxu0 0.0
      %2196 = vmatpush1.msra.mxu0 0.0
      %2197 = vmatprep.subr.mxu0 0.0
      %2198 = vmatpush1.msra.mxu0 0.0
      %2199 = vmatprep.subr.mxu0 0.0
      %2200 = vmatpush1.msra.mxu0 0.0
      %2201 = vmatprep.subr.mxu0 0.0
      %2202 = vmatpush1.msra.mxu0 0.0
      %2203 = vmatprep.subr.mxu0 0.0
      %2204 = vmatpush1.msra.mxu0 0.0
      %2205 = vmatprep.subr.mxu0 0.0
      %2206 = vmatpush1.msra.mxu0 0.0
      %2207 = vmatprep.subr.mxu0 0.0
      %2208 = vmatpush1.msra.mxu0 0.0
      %2209 = vmatprep.subr.mxu0 %v2035
      %2210 = vmatpush1.msra.mxu0 %v2033
      %2211 = vmatprep.subr.mxu0 0.0
      %2212 = vmatpush2.msra.mxu0 0.0
      %2213 = vmatprep.subr.mxu0 0.0
      %2214 = vmatpush2.msra.mxu0 0.0
      %2215 = vmatprep.subr.mxu0 0.0
      %2216 = vmatpush2.msra.mxu0 0.0
      %2217 = vmatprep.subr.mxu0 0.0
      %2218 = vmatpush2.msra.mxu0 0.0
      %2219 = vmatprep.subr.mxu0 0.0
      %2220 = vmatpush2.msra.mxu0 0.0
      %2221 = vmatprep.subr.mxu0 0.0
      %2222 = vmatpush2.msra.mxu0 0.0
      %2223 = vmatprep.subr.mxu0 0.0
      %2224 = vmatpush2.msra.mxu0 0.0
      %2225 = vmatprep.subr.mxu0 0.0
      %2226 = vmatpush2.msra.mxu0 0.0
      %2227 = vmatprep.subr.mxu0 0.0
      %2228 = vmatpush2.msra.mxu0 0.0
      %2229 = vmatprep.subr.mxu0 0.0
      %2230 = vmatpush2.msra.mxu0 0.0
      %2231 = vmatprep.subr.mxu0 0.0
      %2232 = vmatpush2.msra.mxu0 0.0
      %2233 = vmatprep.subr.mxu0 0.0
      %2234 = vmatpush2.msra.mxu0 0.0
      %2235 = vmatprep.subr.mxu0 0.0
      %2236 = vmatpush2.msra.mxu0 0.0
      %2237 = vmatprep.subr.mxu0 0.0
      %2238 = vmatpush2.msra.mxu0 0.0
      %2239 = vmatprep.subr.mxu0 0.0
      %2240 = vmatpush2.msra.mxu0 0.0
      %2241 = vmatprep.subr.mxu0 0.0
      %2242 = vmatpush2.msra.mxu0 0.0
      %2243 = vmatprep.mubr.f32.mxu0 0.0
      %2244 = vmatmul.mubr.f32.gmra.mxu0 %v2023
      %v2245 = vpop.f32.mrf.mxu0
      %v2246 = vadd.f32 0.0, %v2245
      %v2247 = vpop.f32.mrf.mxu0
      %v2248 = vadd.f32 0.0, %v2247
      %2249 = vdwg.mxu0
      %v2250 = vadd.f32 %v1998, %v2104
      %v2251 = vadd.f32 %v1999, %v2106
      %v2252 = vadd.f32 %v2000, %v2175
      %v2253 = vadd.f32 %v2001, %v2177
      %v2254 = vadd.f32 %v2002, %v2246
      %v2255 = vadd.f32 %v2003, %v2248
      %2256 = vrot.lane.b32.xlu0 %v250, 90
      %v2257 = vpop.permute.xlu0 %2256
      %2258 = vrot.lane.b32.xlu0 %v265, 90
      %v2259 = vpop.permute.xlu0 %2258
      %2260 = vrot.lane.b32.xlu0 %v251, 90
      %v2261 = vpop.permute.xlu0 %2260
      %2262 = vrot.lane.b32.xlu0 %v266, 90
      %v2263 = vpop.permute.xlu0 %2262
      %2264 = vrot.lane.b32.xlu0 %v252, 90
      %v2265 = vpop.permute.xlu0 %2264
      %2266 = vrot.lane.b32.xlu0 %v267, 90
      %v2267 = vpop.permute.xlu0 %2266
      %vm2268 = vcmask 736256
      %v2269 = vsel %vm2268, %v2257, %v2259
      %v2270 = vsel %vm2268, %v2259, %v2261
      %v2271 = vsel %vm2268, %v2261, %v2263
      %v2272 = vsel %vm2268, %v2263, %v2265
      %v2273 = vsel %vm2268, %v2265, %v2267
      %v2275 = vsel %vm286, %v261, 0
      %v2277 = vsel %vm290, %v2269, 0
      %v2279 = vsel %vm290, %v2270, 0
      %v2281 = vsel %vm290, %v2271, 0
      %v2283 = vsel %vm290, %v2272, 0
      %v2285 = vsel %vm290, %v2273, 0
      %v2287 = vsel %vm290, %v2267, 0
      %2289 = vmatprep.subr.mxu0 0.0
      %2290 = vmatpush1.msra.mxu0 0.0
      %2291 = vmatprep.subr.mxu0 0.0
      %2292 = vmatpush1.msra.mxu0 0.0
      %2293 = vmatprep.subr.mxu0 0.0
      %2294 = vmatpush1.msra.mxu0 0.0
      %2295 = vmatprep.subr.mxu0 0.0
      %2296 = vmatpush1.msra.mxu0 0.0
      %2297 = vmatprep.subr.mxu0 0.0
      %2298 = vmatpush1.msra.mxu0 0.0
      %2299 = vmatprep.subr.mxu0 0.0
      %2300 = vmatpush1.msra.mxu0 0.0
      %2301 = vmatprep.subr.mxu0 0.0
      %2302 = vmatpush1.msra.mxu0 0.0
      %2303 = vmatprep.subr.mxu0 0.0
      %2304 = vmatpush1.msra.mxu0 0.0
      %2305 = vmatprep.subr.mxu0 0.0
      %2306 = vmatpush1.msra.mxu0 0.0
      %2307 = vmatprep.subr.mxu0 0.0
      %2308 = vmatpush1.msra.mxu0 0.0
      %2309 = vmatprep.subr.mxu0 0.0
      %2310 = vmatpush1.msra.mxu0 0.0
      %2311 = vmatprep.subr.mxu0 0.0
      %2312 = vmatpush1.msra.mxu0 0.0
      %2313 = vmatprep.subr.mxu0 0.0
      %2314 = vmatpush1.msra.mxu0 0.0
      %2315 = vmatprep.subr.mxu0 0.0
      %2316 = vmatpush1.msra.mxu0 0.0
      %2317 = vmatprep.subr.mxu0 0.0
      %2318 = vmatpush1.msra.mxu0 0.0
      %2319 = vmatprep.subr.mxu0 %v2279
      %2320 = vmatpush1.msra.mxu0 %v2277
      %2321 = vmatprep.subr.mxu0 0.0
      %2322 = vmatpush2.msra.mxu0 0.0
      %2323 = vmatprep.subr.mxu0 0.0
      %2324 = vmatpush2.msra.mxu0 0.0
      %2325 = vmatprep.subr.mxu0 0.0
      %2326 = vmatpush2.msra.mxu0 0.0
      %2327 = vmatprep.subr.mxu0 0.0
      %2328 = vmatpush2.msra.mxu0 0.0
      %2329 = vmatprep.subr.mxu0 0.0
      %2330 = vmatpush2.msra.mxu0 0.0
      %2331 = vmatprep.subr.mxu0 0.0
      %2332 = vmatpush2.msra.mxu0 0.0
      %2333 = vmatprep.subr.mxu0 0.0
      %2334 = vmatpush2.msra.mxu0 0.0
      %2335 = vmatprep.subr.mxu0 0.0
      %2336 = vmatpush2.msra.mxu0 0.0
      %2337 = vmatprep.subr.mxu0 0.0
      %2338 = vmatpush2.msra.mxu0 0.0
      %2339 = vmatprep.subr.mxu0 0.0
      %2340 = vmatpush2.msra.mxu0 0.0
      %2341 = vmatprep.subr.mxu0 0.0
      %2342 = vmatpush2.msra.mxu0 0.0
      %2343 = vmatprep.subr.mxu0 0.0
      %2344 = vmatpush2.msra.mxu0 0.0
      %2345 = vmatprep.subr.mxu0 0.0
      %2346 = vmatpush2.msra.mxu0 0.0
      %2347 = vmatprep.subr.mxu0 0.0
      %2348 = vmatpush2.msra.mxu0 0.0
      %2349 = vmatprep.subr.mxu0 0.0
      %2350 = vmatpush2.msra.mxu0 0.0
      %2351 = vmatprep.subr.mxu0 0.0
      %2352 = vmatpush2.msra.mxu0 0.0
      %2353 = vmatprep.mubr.f32.mxu0 0.0
      %2354 = vmatmul.mubr.f32.gmra.mxu0 %v2275
      %v2355 = vpop.f32.mrf.mxu0
      %v2356 = vadd.f32 0.0, %v2355
      %v2357 = vpop.f32.mrf.mxu0
      %v2358 = vadd.f32 0.0, %v2357
      %2359 = vdwg.mxu0
      %2360 = vmatprep.subr.mxu0 0.0
      %2361 = vmatpush1.msra.mxu0 0.0
      %2362 = vmatprep.subr.mxu0 0.0
      %2363 = vmatpush1.msra.mxu0 0.0
      %2364 = vmatprep.subr.mxu0 0.0
      %2365 = vmatpush1.msra.mxu0 0.0
      %2366 = vmatprep.subr.mxu0 0.0
      %2367 = vmatpush1.msra.mxu0 0.0
      %2368 = vmatprep.subr.mxu0 0.0
      %2369 = vmatpush1.msra.mxu0 0.0
      %2370 = vmatprep.subr.mxu0 0.0
      %2371 = vmatpush1.msra.mxu0 0.0
      %2372 = vmatprep.subr.mxu0 0.0
      %2373 = vmatpush1.msra.mxu0 0.0
      %2374 = vmatprep.subr.mxu0 0.0
      %2375 = vmatpush1.msra.mxu0 0.0
      %2376 = vmatprep.subr.mxu0 0.0
      %2377 = vmatpush1.msra.mxu0 0.0
      %2378 = vmatprep.subr.mxu0 0.0
      %2379 = vmatpush1.msra.mxu0 0.0
      %2380 = vmatprep.subr.mxu0 0.0
      %2381 = vmatpush1.msra.mxu0 0.0
      %2382 = vmatprep.subr.mxu0 0.0
      %2383 = vmatpush1.msra.mxu0 0.0
      %2384 = vmatprep.subr.mxu0 0.0
      %2385 = vmatpush1.msra.mxu0 0.0
      %2386 = vmatprep.subr.mxu0 0.0
      %2387 = vmatpush1.msra.mxu0 0.0
      %2388 = vmatprep.subr.mxu0 0.0
      %2389 = vmatpush1.msra.mxu0 0.0
      %2390 = vmatprep.subr.mxu0 %v2283
      %2391 = vmatpush1.msra.mxu0 %v2281
      %2392 = vmatprep.subr.mxu0 0.0
      %2393 = vmatpush2.msra.mxu0 0.0
      %2394 = vmatprep.subr.mxu0 0.0
      %2395 = vmatpush2.msra.mxu0 0.0
      %2396 = vmatprep.subr.mxu0 0.0
      %2397 = vmatpush2.msra.mxu0 0.0
      %2398 = vmatprep.subr.mxu0 0.0
      %2399 = vmatpush2.msra.mxu0 0.0
      %2400 = vmatprep.subr.mxu0 0.0
      %2401 = vmatpush2.msra.mxu0 0.0
      %2402 = vmatprep.subr.mxu0 0.0
      %2403 = vmatpush2.msra.mxu0 0.0
      %2404 = vmatprep.subr.mxu0 0.0
      %2405 = vmatpush2.msra.mxu0 0.0
      %2406 = vmatprep.subr.mxu0 0.0
      %2407 = vmatpush2.msra.mxu0 0.0
      %2408 = vmatprep.subr.mxu0 0.0
      %2409 = vmatpush2.msra.mxu0 0.0
      %2410 = vmatprep.subr.mxu0 0.0
      %2411 = vmatpush2.msra.mxu0 0.0
      %2412 = vmatprep.subr.mxu0 0.0
      %2413 = vmatpush2.msra.mxu0 0.0
      %2414 = vmatprep.subr.mxu0 0.0
      %2415 = vmatpush2.msra.mxu0 0.0
      %2416 = vmatprep.subr.mxu0 0.0
      %2417 = vmatpush2.msra.mxu0 0.0
      %2418 = vmatprep.subr.mxu0 0.0
      %2419 = vmatpush2.msra.mxu0 0.0
      %2420 = vmatprep.subr.mxu0 0.0
      %2421 = vmatpush2.msra.mxu0 0.0
      %2422 = vmatprep.subr.mxu0 0.0
      %2423 = vmatpush2.msra.mxu0 0.0
      %2424 = vmatprep.mubr.f32.mxu0 0.0
      %2425 = vmatmul.mubr.f32.gmra.mxu0 %v2275
      %v2426 = vpop.f32.mrf.mxu0
      %v2427 = vadd.f32 0.0, %v2426
      %v2428 = vpop.f32.mrf.mxu0
      %v2429 = vadd.f32 0.0, %v2428
      %2430 = vdwg.mxu0
      %2431 = vmatprep.subr.mxu0 0.0
      %2432 = vmatpush1.msra.mxu0 0.0
      %2433 = vmatprep.subr.mxu0 0.0
      %2434 = vmatpush1.msra.mxu0 0.0
      %2435 = vmatprep.subr.mxu0 0.0
      %2436 = vmatpush1.msra.mxu0 0.0
      %2437 = vmatprep.subr.mxu0 0.0
      %2438 = vmatpush1.msra.mxu0 0.0
      %2439 = vmatprep.subr.mxu0 0.0
      %2440 = vmatpush1.msra.mxu0 0.0
      %2441 = vmatprep.subr.mxu0 0.0
      %2442 = vmatpush1.msra.mxu0 0.0
      %2443 = vmatprep.subr.mxu0 0.0
      %2444 = vmatpush1.msra.mxu0 0.0
      %2445 = vmatprep.subr.mxu0 0.0
      %2446 = vmatpush1.msra.mxu0 0.0
      %2447 = vmatprep.subr.mxu0 0.0
      %2448 = vmatpush1.msra.mxu0 0.0
      %2449 = vmatprep.subr.mxu0 0.0
      %2450 = vmatpush1.msra.mxu0 0.0
      %2451 = vmatprep.subr.mxu0 0.0
      %2452 = vmatpush1.msra.mxu0 0.0
      %2453 = vmatprep.subr.mxu0 0.0
      %2454 = vmatpush1.msra.mxu0 0.0
      %2455 = vmatprep.subr.mxu0 0.0
      %2456 = vmatpush1.msra.mxu0 0.0
      %2457 = vmatprep.subr.mxu0 0.0
      %2458 = vmatpush1.msra.mxu0 0.0
      %2459 = vmatprep.subr.mxu0 0.0
      %2460 = vmatpush1.msra.mxu0 0.0
      %2461 = vmatprep.subr.mxu0 %v2287
      %2462 = vmatpush1.msra.mxu0 %v2285
      %2463 = vmatprep.subr.mxu0 0.0
      %2464 = vmatpush2.msra.mxu0 0.0
      %2465 = vmatprep.subr.mxu0 0.0
      %2466 = vmatpush2.msra.mxu0 0.0
      %2467 = vmatprep.subr.mxu0 0.0
      %2468 = vmatpush2.msra.mxu0 0.0
      %2469 = vmatprep.subr.mxu0 0.0
      %2470 = vmatpush2.msra.mxu0 0.0
      %2471 = vmatprep.subr.mxu0 0.0
      %2472 = vmatpush2.msra.mxu0 0.0
      %2473 = vmatprep.subr.mxu0 0.0
      %2474 = vmatpush2.msra.mxu0 0.0
      %2475 = vmatprep.subr.mxu0 0.0
      %2476 = vmatpush2.msra.mxu0 0.0
      %2477 = vmatprep.subr.mxu0 0.0
      %2478 = vmatpush2.msra.mxu0 0.0
      %2479 = vmatprep.subr.mxu0 0.0
      %2480 = vmatpush2.msra.mxu0 0.0
      %2481 = vmatprep.subr.mxu0 0.0
      %2482 = vmatpush2.msra.mxu0 0.0
      %2483 = vmatprep.subr.mxu0 0.0
      %2484 = vmatpush2.msra.mxu0 0.0
      %2485 = vmatprep.subr.mxu0 0.0
      %2486 = vmatpush2.msra.mxu0 0.0
      %2487 = vmatprep.subr.mxu0 0.0
      %2488 = vmatpush2.msra.mxu0 0.0
      %2489 = vmatprep.subr.mxu0 0.0
      %2490 = vmatpush2.msra.mxu0 0.0
      %2491 = vmatprep.subr.mxu0 0.0
      %2492 = vmatpush2.msra.mxu0 0.0
      %2493 = vmatprep.subr.mxu0 0.0
      %2494 = vmatpush2.msra.mxu0 0.0
      %2495 = vmatprep.mubr.f32.mxu0 0.0
      %2496 = vmatmul.mubr.f32.gmra.mxu0 %v2275
      %v2497 = vpop.f32.mrf.mxu0
      %v2498 = vadd.f32 0.0, %v2497
      %v2499 = vpop.f32.mrf.mxu0
      %v2500 = vadd.f32 0.0, %v2499
      %2501 = vdwg.mxu0
      %v2502 = vadd.f32 %v2250, %v2356
      %v2503 = vadd.f32 %v2251, %v2358
      %v2504 = vadd.f32 %v2252, %v2427
      %v2505 = vadd.f32 %v2253, %v2429
      %v2506 = vadd.f32 %v2254, %v2498
      %v2507 = vadd.f32 %v2255, %v2500
      %v2508 = vld [vmem:[%s2] sm:$0xff]
      %2510 = vset.pattern.permute.xlu0 0
      %2511 = vperm.xlu0 %2510, %v2508
      %v2512 = vpop.permute.xlu0 %2511
      %v2514 = vadd.f32 %v2502, %v2512
      %v2515 = vadd.f32 %v2503, %v2512
      %v2516 = vadd.f32 %v2504, %v2512
      %v2517 = vadd.f32 %v2505, %v2512
      %v2518 = vadd.f32 %v2506, %v2512
      %v2519 = vadd.f32 %v2507, %v2512
      %v2520 = vmax.f32 %v2514, 0.0
      %v2521 = vmax.f32 %v2515, 0.0
      %v2522 = vmax.f32 %v2516, 0.0
      %v2523 = vmax.f32 %v2517, 0.0
      %v2524 = vmax.f32 %v2518, 0.0
      %v2525 = vmax.f32 %v2519, 0.0
      %v2526 = vld [vmem:[%s3] sm:$0xff]
      %v2527 = vld [vmem:[%s3 + $0x8] sm:$0xf]
      %v2530 = vcombine.high %v2526, %v2526
      %v2532 = vunpack.c.l.s4 1983009808
      %v2533 = vunpack.c.0.s8 %v2532
      %v2534 = vlaneseq
      %v2535 = vshrl.u32 %v2534, 7
      %v2536 = vsub.s32 %v2533, %v2535
      %v2537 = vrot.slane %v2526, %v2536
      %v2539 = vunpack.c.l.s4 1983009808
      %v2540 = vunpack.c.0.s8 %v2539
      %v2541 = vlaneseq
      %v2542 = vshrl.u32 %v2541, 7
      %v2543 = vsub.s32 %v2540, %v2542
      %v2544 = vrot.slane %v2530, %v2543
      %v2545 = vcombine.high %v2537, %v2537
      %v2546 = vcombine.high %v2544, %v2544
      %v2548 = vunpack.c.l.s4 1983009808
      %v2549 = vunpack.c.0.s8 %v2548
      %v2550 = vlaneseq
      %v2551 = vshrl.u32 %v2550, 7
      %v2552 = vsub.s32 %v2549, %v2551
      %v2553 = vrot.slane %v2527, %v2552
      %v2554 = vcombine.high %v2553, %v2553
      %vm2560 = vcmask 64512
      %v2561 = vsel %vm2560, %v2554, 0
      %v2564 = vsel %vm2560, %v2525, 0
      %2566 = vmatprep.subr.mxu0 0.0
      %2567 = vmatpush1.xpose.msra.mxu0 0.0
      %2568 = vmatprep.subr.mxu0 0.0
      %2569 = vmatpush1.xpose.msra.mxu0 0.0
      %2570 = vmatprep.subr.mxu0 0.0
      %2571 = vmatpush1.xpose.msra.mxu0 0.0
      %2572 = vmatprep.subr.mxu0 0.0
      %2573 = vmatpush1.xpose.msra.mxu0 0.0
      %2574 = vmatprep.subr.mxu0 0.0
      %2575 = vmatpush1.xpose.msra.mxu0 0.0
      %2576 = vmatprep.subr.mxu0 0.0
      %2577 = vmatpush1.xpose.msra.mxu0 0.0
      %2578 = vmatprep.subr.mxu0 0.0
      %2579 = vmatpush1.xpose.msra.mxu0 0.0
      %2580 = vmatprep.subr.mxu0 0.0
      %2581 = vmatpush1.xpose.msra.mxu0 0.0
      %2582 = vmatprep.subr.mxu0 0.0
      %2583 = vmatpush1.xpose.msra.mxu0 0.0
      %2584 = vmatprep.subr.mxu0 0.0
      %2585 = vmatpush1.xpose.msra.mxu0 0.0
      %2586 = vmatprep.subr.mxu0 0.0
      %2587 = vmatpush1.xpose.msra.mxu0 0.0
      %2588 = vmatprep.subr.mxu0 0.0
      %2589 = vmatpush1.xpose.msra.mxu0 0.0
      %2590 = vmatprep.subr.mxu0 0.0
      %2591 = vmatpush1.xpose.msra.mxu0 0.0
      %2592 = vmatprep.subr.mxu0 0.0
      %2593 = vmatpush1.xpose.msra.mxu0 0.0
      %2594 = vmatprep.subr.mxu0 0.0
      %2595 = vmatpush1.xpose.msra.mxu0 0.0
      %2596 = vmatprep.subr.mxu0 %v2521
      %2597 = vmatpush1.xpose.msra.mxu0 %v2520
      %2598 = vmatprep.subr.mxu0 0.0
      %2599 = vmatpush2.xpose.msra.mxu0 0.0
      %2600 = vmatprep.subr.mxu0 0.0
      %2601 = vmatpush2.xpose.msra.mxu0 0.0
      %2602 = vmatprep.subr.mxu0 0.0
      %2603 = vmatpush2.xpose.msra.mxu0 0.0
      %2604 = vmatprep.subr.mxu0 0.0
      %2605 = vmatpush2.xpose.msra.mxu0 0.0
      %2606 = vmatprep.subr.mxu0 0.0
      %2607 = vmatpush2.xpose.msra.mxu0 0.0
      %2608 = vmatprep.subr.mxu0 0.0
      %2609 = vmatpush2.xpose.msra.mxu0 0.0
      %2610 = vmatprep.subr.mxu0 0.0
      %2611 = vmatpush2.xpose.msra.mxu0 0.0
      %2612 = vmatprep.subr.mxu0 0.0
      %2613 = vmatpush2.xpose.msra.mxu0 0.0
      %2614 = vmatprep.subr.mxu0 0.0
      %2615 = vmatpush2.xpose.msra.mxu0 0.0
      %2616 = vmatprep.subr.mxu0 0.0
      %2617 = vmatpush2.xpose.msra.mxu0 0.0
      %2618 = vmatprep.subr.mxu0 0.0
      %2619 = vmatpush2.xpose.msra.mxu0 0.0
      %2620 = vmatprep.subr.mxu0 0.0
      %2621 = vmatpush2.xpose.msra.mxu0 0.0
      %2622 = vmatprep.subr.mxu0 0.0
      %2623 = vmatpush2.xpose.msra.mxu0 0.0
      %2624 = vmatprep.subr.mxu0 0.0
      %2625 = vmatpush2.xpose.msra.mxu0 0.0
      %2626 = vmatprep.subr.mxu0 0.0
      %2627 = vmatpush2.xpose.msra.mxu0 0.0
      %2628 = vmatprep.subr.mxu0 0.0
      %2629 = vmatpush2.xpose.msra.mxu0 0.0
      %2630 = vmatprep.mubr.f32.mxu0 %v2545
      %2631 = vmatmul.mubr.f32.gmra.mxu0 %v2537
      %v2632 = vpop.f32.mrf.mxu0
      %v2633 = vadd.f32 0.0, %v2632
      %v2634 = vpop.f32.mrf.mxu0
      %2635 = vdwg.mxu0
      %2636 = vmatprep.subr.mxu0 0.0
      %2637 = vmatpush1.xpose.msra.mxu0 0.0
      %2638 = vmatprep.subr.mxu0 0.0
      %2639 = vmatpush1.xpose.msra.mxu0 0.0
      %2640 = vmatprep.subr.mxu0 0.0
      %2641 = vmatpush1.xpose.msra.mxu0 0.0
      %2642 = vmatprep.subr.mxu0 0.0
      %2643 = vmatpush1.xpose.msra.mxu0 0.0
      %2644 = vmatprep.subr.mxu0 0.0
      %2645 = vmatpush1.xpose.msra.mxu0 0.0
      %2646 = vmatprep.subr.mxu0 0.0
      %2647 = vmatpush1.xpose.msra.mxu0 0.0
      %2648 = vmatprep.subr.mxu0 0.0
      %2649 = vmatpush1.xpose.msra.mxu0 0.0
      %2650 = vmatprep.subr.mxu0 0.0
      %2651 = vmatpush1.xpose.msra.mxu0 0.0
      %2652 = vmatprep.subr.mxu0 0.0
      %2653 = vmatpush1.xpose.msra.mxu0 0.0
      %2654 = vmatprep.subr.mxu0 0.0
      %2655 = vmatpush1.xpose.msra.mxu0 0.0
      %2656 = vmatprep.subr.mxu0 0.0
      %2657 = vmatpush1.xpose.msra.mxu0 0.0
      %2658 = vmatprep.subr.mxu0 0.0
      %2659 = vmatpush1.xpose.msra.mxu0 0.0
      %2660 = vmatprep.subr.mxu0 0.0
      %2661 = vmatpush1.xpose.msra.mxu0 0.0
      %2662 = vmatprep.subr.mxu0 0.0
      %2663 = vmatpush1.xpose.msra.mxu0 0.0
      %2664 = vmatprep.subr.mxu0 0.0
      %2665 = vmatpush1.xpose.msra.mxu0 0.0
      %2666 = vmatprep.subr.mxu0 %v2523
      %2667 = vmatpush1.xpose.msra.mxu0 %v2522
      %2668 = vmatprep.subr.mxu0 0.0
      %2669 = vmatpush2.xpose.msra.mxu0 0.0
      %2670 = vmatprep.subr.mxu0 0.0
      %2671 = vmatpush2.xpose.msra.mxu0 0.0
      %2672 = vmatprep.subr.mxu0 0.0
      %2673 = vmatpush2.xpose.msra.mxu0 0.0
      %2674 = vmatprep.subr.mxu0 0.0
      %2675 = vmatpush2.xpose.msra.mxu0 0.0
      %2676 = vmatprep.subr.mxu0 0.0
      %2677 = vmatpush2.xpose.msra.mxu0 0.0
      %2678 = vmatprep.subr.mxu0 0.0
      %2679 = vmatpush2.xpose.msra.mxu0 0.0
      %2680 = vmatprep.subr.mxu0 0.0
      %2681 = vmatpush2.xpose.msra.mxu0 0.0
      %2682 = vmatprep.subr.mxu0 0.0
      %2683 = vmatpush2.xpose.msra.mxu0 0.0
      %2684 = vmatprep.subr.mxu0 0.0
      %2685 = vmatpush2.xpose.msra.mxu0 0.0
      %2686 = vmatprep.subr.mxu0 0.0
      %2687 = vmatpush2.xpose.msra.mxu0 0.0
      %2688 = vmatprep.subr.mxu0 0.0
      %2689 = vmatpush2.xpose.msra.mxu0 0.0
      %2690 = vmatprep.subr.mxu0 0.0
      %2691 = vmatpush2.xpose.msra.mxu0 0.0
      %2692 = vmatprep.subr.mxu0 0.0
      %2693 = vmatpush2.xpose.msra.mxu0 0.0
      %2694 = vmatprep.subr.mxu0 0.0
      %2695 = vmatpush2.xpose.msra.mxu0 0.0
      %2696 = vmatprep.subr.mxu0 0.0
      %2697 = vmatpush2.xpose.msra.mxu0 0.0
      %2698 = vmatprep.subr.mxu0 0.0
      %2699 = vmatpush2.xpose.msra.mxu0 0.0
      %2700 = vmatprep.mubr.f32.mxu0 %v2546
      %2701 = vmatmul.mubr.f32.gmra.mxu0 %v2544
      %v2702 = vpop.f32.mrf.mxu0
      %v2703 = vadd.f32 %v2633, %v2702
      %v2704 = vpop.f32.mrf.mxu0
      %2705 = vdwg.mxu0
      %2706 = vmatprep.subr.mxu0 0.0
      %2707 = vmatpush1.xpose.msra.mxu0 0.0
      %2708 = vmatprep.subr.mxu0 0.0
      %2709 = vmatpush1.xpose.msra.mxu0 0.0
      %2710 = vmatprep.subr.mxu0 0.0
      %2711 = vmatpush1.xpose.msra.mxu0 0.0
      %2712 = vmatprep.subr.mxu0 0.0
      %2713 = vmatpush1.xpose.msra.mxu0 0.0
      %2714 = vmatprep.subr.mxu0 0.0
      %2715 = vmatpush1.xpose.msra.mxu0 0.0
      %2716 = vmatprep.subr.mxu0 0.0
      %2717 = vmatpush1.xpose.msra.mxu0 0.0
      %2718 = vmatprep.subr.mxu0 0.0
      %2719 = vmatpush1.xpose.msra.mxu0 0.0
      %2720 = vmatprep.subr.mxu0 0.0
      %2721 = vmatpush1.xpose.msra.mxu0 0.0
      %2722 = vmatprep.subr.mxu0 0.0
      %2723 = vmatpush1.xpose.msra.mxu0 0.0
      %2724 = vmatprep.subr.mxu0 0.0
      %2725 = vmatpush1.xpose.msra.mxu0 0.0
      %2726 = vmatprep.subr.mxu0 0.0
      %2727 = vmatpush1.xpose.msra.mxu0 0.0
      %2728 = vmatprep.subr.mxu0 0.0
      %2729 = vmatpush1.xpose.msra.mxu0 0.0
      %2730 = vmatprep.subr.mxu0 0.0
      %2731 = vmatpush1.xpose.msra.mxu0 0.0
      %2732 = vmatprep.subr.mxu0 0.0
      %2733 = vmatpush1.xpose.msra.mxu0 0.0
      %2734 = vmatprep.subr.mxu0 0.0
      %2735 = vmatpush1.xpose.msra.mxu0 0.0
      %2736 = vmatprep.subr.mxu0 %v2564
      %2737 = vmatpush1.xpose.msra.mxu0 %v2524
      %2738 = vmatprep.subr.mxu0 0.0
      %2739 = vmatpush2.xpose.msra.mxu0 0.0
      %2740 = vmatprep.subr.mxu0 0.0
      %2741 = vmatpush2.xpose.msra.mxu0 0.0
      %2742 = vmatprep.subr.mxu0 0.0
      %2743 = vmatpush2.xpose.msra.mxu0 0.0
      %2744 = vmatprep.subr.mxu0 0.0
      %2745 = vmatpush2.xpose.msra.mxu0 0.0
      %2746 = vmatprep.subr.mxu0 0.0
      %2747 = vmatpush2.xpose.msra.mxu0 0.0
      %2748 = vmatprep.subr.mxu0 0.0
      %2749 = vmatpush2.xpose.msra.mxu0 0.0
      %2750 = vmatprep.subr.mxu0 0.0
      %2751 = vmatpush2.xpose.msra.mxu0 0.0
      %2752 = vmatprep.subr.mxu0 0.0
      %2753 = vmatpush2.xpose.msra.mxu0 0.0
      %2754 = vmatprep.subr.mxu0 0.0
      %2755 = vmatpush2.xpose.msra.mxu0 0.0
      %2756 = vmatprep.subr.mxu0 0.0
      %2757 = vmatpush2.xpose.msra.mxu0 0.0
      %2758 = vmatprep.subr.mxu0 0.0
      %2759 = vmatpush2.xpose.msra.mxu0 0.0
      %2760 = vmatprep.subr.mxu0 0.0
      %2761 = vmatpush2.xpose.msra.mxu0 0.0
      %2762 = vmatprep.subr.mxu0 0.0
      %2763 = vmatpush2.xpose.msra.mxu0 0.0
      %2764 = vmatprep.subr.mxu0 0.0
      %2765 = vmatpush2.xpose.msra.mxu0 0.0
      %2766 = vmatprep.subr.mxu0 0.0
      %2767 = vmatpush2.xpose.msra.mxu0 0.0
      %2768 = vmatprep.subr.mxu0 0.0
      %2769 = vmatpush2.xpose.msra.mxu0 0.0
      %2770 = vmatprep.mubr.f32.mxu0 %v2561
      %2771 = vmatmul.mubr.f32.gmra.mxu0 %v2553
      %v2772 = vpop.f32.mrf.mxu0
      %v2773 = vadd.f32 %v2703, %v2772
      %v2774 = vpop.f32.mrf.mxu0
      %2775 = vdwg.mxu0
      %v2776 = vld [vmem:[%s4] sm:$0xff]
      %v2777 = vld [vmem:[%s5] sm:$0x1]
      %v2779 = vlaneseq
      %v2780 = vshrl.u32 %v2779, 7
      %v2781 = vsub.s32 0, %v2780
      %v2782 = vrot.slane %v2777, %v2781
      %v2785 = vsel %vm2560, %v2773, 0
      %2787 = vmatprep.subr.mxu0 0.0
      %2788 = vmatpush1.msra.mxu0 0.0
      %2789 = vmatprep.subr.mxu0 0.0
      %2790 = vmatpush1.msra.mxu0 0.0
      %2791 = vmatprep.subr.mxu0 0.0
      %2792 = vmatpush1.msra.mxu0 0.0
      %2793 = vmatprep.subr.mxu0 0.0
      %2794 = vmatpush1.msra.mxu0 0.0
      %2795 = vmatprep.subr.mxu0 0.0
      %2796 = vmatpush1.msra.mxu0 0.0
      %2797 = vmatprep.subr.mxu0 0.0
      %2798 = vmatpush1.msra.mxu0 0.0
      %2799 = vmatprep.subr.mxu0 0.0
      %2800 = vmatpush1.msra.mxu0 0.0
      %2801 = vmatprep.subr.mxu0 0.0
      %2802 = vmatpush1.msra.mxu0 0.0
      %2803 = vmatprep.subr.mxu0 0.0
      %2804 = vmatpush1.msra.mxu0 0.0
      %2805 = vmatprep.subr.mxu0 0.0
      %2806 = vmatpush1.msra.mxu0 0.0
      %2807 = vmatprep.subr.mxu0 0.0
      %2808 = vmatpush1.msra.mxu0 0.0
      %2809 = vmatprep.subr.mxu0 0.0
      %2810 = vmatpush1.msra.mxu0 0.0
      %2811 = vmatprep.subr.mxu0 0.0
      %2812 = vmatpush1.msra.mxu0 0.0
      %2813 = vmatprep.subr.mxu0 0.0
      %2814 = vmatpush1.msra.mxu0 0.0
      %2815 = vmatprep.subr.mxu0 0.0
      %2816 = vmatpush1.msra.mxu0 0.0
      %2817 = vmatprep.subr.mxu0 0.0
      %2818 = vmatpush1.msra.mxu0 %v2776
      %2819 = vmatprep.subr.mxu0 0.0
      %2820 = vmatpush2.msra.mxu0 0.0
      %2821 = vmatprep.subr.mxu0 0.0
      %2822 = vmatpush2.msra.mxu0 0.0
      %2823 = vmatprep.subr.mxu0 0.0
      %2824 = vmatpush2.msra.mxu0 0.0
      %2825 = vmatprep.subr.mxu0 0.0
      %2826 = vmatpush2.msra.mxu0 0.0
      %2827 = vmatprep.subr.mxu0 0.0
      %2828 = vmatpush2.msra.mxu0 0.0
      %2829 = vmatprep.subr.mxu0 0.0
      %2830 = vmatpush2.msra.mxu0 0.0
      %2831 = vmatprep.subr.mxu0 0.0
      %2832 = vmatpush2.msra.mxu0 0.0
      %2833 = vmatprep.subr.mxu0 0.0
      %2834 = vmatpush2.msra.mxu0 0.0
      %2835 = vmatprep.subr.mxu0 0.0
      %2836 = vmatpush2.msra.mxu0 0.0
      %2837 = vmatprep.subr.mxu0 0.0
      %2838 = vmatpush2.msra.mxu0 0.0
      %2839 = vmatprep.subr.mxu0 0.0
      %2840 = vmatpush2.msra.mxu0 0.0
      %2841 = vmatprep.subr.mxu0 0.0
      %2842 = vmatpush2.msra.mxu0 0.0
      %2843 = vmatprep.subr.mxu0 0.0
      %2844 = vmatpush2.msra.mxu0 0.0
      %2845 = vmatprep.subr.mxu0 0.0
      %2846 = vmatpush2.msra.mxu0 0.0
      %2847 = vmatprep.subr.mxu0 0.0
      %2848 = vmatpush2.msra.mxu0 0.0
      %2849 = vmatprep.subr.mxu0 0.0
      %2850 = vmatpush2.msra.mxu0 0.0
      %2851 = vmatprep.mubr.f32.mxu0 0.0
      %2852 = vmatmul.mubr.f32.gmra.mxu0 %v2785
      %v2853 = vpop.f32.mrf.mxu0
      %v2854 = vadd.f32 %v2782, %v2853
      %v2855 = vpop.f32.mrf.mxu0
      %2856 = vdwg.mxu0
      %vm2857 = vcmask 254976
      %2858 = vst.msk [vmem:[%s249] sm:$0x3] %vm2857, %v2854
      %p2859 = scmp.lt.s32.totalorder %s17, 1
      %s2860 = scalar_select %p2859, %s17, 1
      %s2861 = smul.addr %s2860, 2
      %s2862 = scalar_lea.vmem %s6, %s2861
      // Predicated region
      $region45: #{siamese_net_cont_forward.1} parent=43 // pred_check
        %p2863 = pneg %p166
      $region46: #{siamese_net_cont_forward.1} parent=43 // pred_check_branch
        %2865 = sbr.rel (%p2863) target = $region48
      $region47: #{siamese_net_cont_forward.1} parent=43 // pred_region
        _
      $region48: #{siamese_net_cont_forward.1} parent=43 // pred_fallthru
        _
    $region44: #{siamese_net_cont_forward.1} parent=5 // pred_fallthru
      _
    %p2866 = scmp.le.s32.totalorder 2, %s12
    // Predicated region
    $region49: #{siamese_net_cont_forward.1} parent=5 // pred_check
      %p2867 = pneg %p2866
    $region50: #{siamese_net_cont_forward.1} parent=5 // pred_check_branch
      %2869 = sbr.rel (%p2867) target = $region52
    $region51: #{siamese_net_cont_forward.1} parent=5 // pred_region
      %s2870 = ssub.s32 %s12, 2
      // Predicated region
      $region53: #{siamese_net_cont_forward.1} parent=51 // pred_check
        %p2871 = pneg %p172
      $region54: #{siamese_net_cont_forward.1} parent=51 // pred_check_branch
        %2873 = sbr.rel (%p2871) target = $region56
      $region55: #{siamese_net_cont_forward.1} parent=51 // pred_region
        %p2874 = scmp.lt.s32.totalorder %s18, 1
        %s2875 = scalar_select %p2874, %s18, 1
        %s2876 = smul.addr %s2875, 2
        %s2877 = scalar_lea.vmem %s6, %s2876
      $region56: #{siamese_net_cont_forward.1} parent=51 // pred_fallthru
        _
    $region52: #{siamese_net_cont_forward.1} parent=5 // pred_fallthru
      _
  $region6: #{siamese_net_cont_forward.1} parent=0 // loop_footer
    %s16 = sadd.s32 1, %s12
  $region7: #{siamese_net_cont_forward.1} parent=0 // loop_footer_branch
    %11 = sbr.rel target = $region3
  $region8: #{siamese_net_cont_forward.1} parent=0 // loop_exit
    _

</llo_original>
